<compile_context>
chip_gen: v7x
topology: tpu7x:2x2x1
jax: 0.10.0
libtpu: 0.0.40
codegen_flags: <defaults>
</compile_context>

<pallas_src>
import functools
import math

import jax
import jax.numpy as jnp
from jax import lax
from jax.experimental import pallas as pl
from jax.experimental.pallas import tpu as pltpu

INPUT_SIZE = 1
HIDDEN_SIZE = 64
OUTPUT_SIZE = 1


def lstm_forecast_kernel(x_ref,      # (T, Bt, I)   f32  time-major input tile
                         win1_ref,   # (I, 4H)      f32  layer-1 input weights
                         b1_ref,     # (1, 4H)      f32  b_ih1 + b_hh1
                         whh1_ref,   # (H, 4H)      bf16 layer-1 recurrent weights
                         wih2_ref,   # (H, 4H)      bf16 layer-2 input weights
                         whh2_ref,   # (H, 4H)      bf16 layer-2 recurrent weights
                         b2_ref,     # (1, 4H)      f32  b_ih2 + b_hh2
                         wfc_ref,    # (H, Np)      f32  fc weights (lane-padded)
                         bfc_ref,    # (1, Np)      f32  fc bias (lane-padded)
                         out_ref,    # (Bt, Np)     f32
                         *, unroll):
    T, Bt, I = x_ref.shape
    H = whh1_ref.shape[0]

    # Hoist small loop invariants, pre-broadcast once (broadcast_in_dim is not
    # CSE'd if left inside the loop).
    w_in = [jnp.broadcast_to(win1_ref[ii:ii + 1, :], (Bt, 4 * H))
            for ii in range(I)]
    b1b = jnp.broadcast_to(b1_ref[...], (Bt, 4 * H))
    b2b = jnp.broadcast_to(b2_ref[...], (Bt, 4 * H))

    def gates_to_hc(gates, c):
        # Gate column order is [i, f, o, g]: one sigmoid over 3H lanes and one
        # tanh over H (2 EUP dispatches per cell). All gate math stays f32.
        act = jax.nn.sigmoid(gates[:, :3 * H])
        g = jnp.tanh(gates[:, 3 * H:])
        i_g = act[:, 0 * H:1 * H]
        f_g = act[:, 1 * H:2 * H]
        o_g = act[:, 2 * H:3 * H]
        c_new = f_g * c + i_g * g
        h_new = o_g * jnp.tanh(c_new)
        return h_new, c_new

    def step(t, carry):
        h1, c1, h2, c2 = carry

        # Layer-2 recurrent product first: depends only on the previous carry,
        # so this MXU push overlaps layer-1's matmul and gate math.
        g2_rec = jnp.dot(h2.astype(jnp.bfloat16), whh2_ref[...],
                         preferred_element_type=jnp.float32)

        # Layer-1 input projection: I=1 -> broadcast FMA on the VPU, no scratch,
        # no K=1 matmul on the serial chain.
        x_t = x_ref[t]                                     # (Bt, I) f32
        g1 = b1b
        for ii in range(I):
            g1 = g1 + x_t[:, ii:ii + 1] * w_in[ii]
        g1 = g1 + jnp.dot(h1.astype(jnp.bfloat16), whh1_ref[...],
                          preferred_element_type=jnp.float32)
        h1, c1 = gates_to_hc(g1, c1)

        # Layer-2 input product on the fresh h1 (only this dot sits behind h1).
        g2 = g2_rec + b2b + jnp.dot(h1.astype(jnp.bfloat16), wih2_ref[...],
                                    preferred_element_type=jnp.float32)
        h2, c2 = gates_to_hc(g2, c2)
        return h1, c1, h2, c2

    zeros = jnp.zeros((Bt, H), jnp.float32)        # h0 = c0 = 0, as in PyTorch
    _, _, h2_T, _ = lax.fori_loop(0, T, step, (zeros, zeros, zeros, zeros),
                                  unroll=unroll)

    # fc head on the last time step of the top layer (lane-padded -> unmasked vst).
    out_ref[...] = (jnp.dot(h2_T, wfc_ref[...],
                            preferred_element_type=jnp.float32) + bfc_ref[...])


def _reorder_gate_cols(w):
    """Permute last-dim gate blocks from PyTorch [i, f, g, o] to [i, f, o, g]."""
    i, f, g, o = jnp.split(w, 4, axis=-1)
    return jnp.concatenate([i, f, o, g], axis=-1)


def init_params(key, input_size=INPUT_SIZE, hidden_size=HIDDEN_SIZE,
                output_size=OUTPUT_SIZE):
    """Deterministic init mimicking PyTorch uniform(-1/sqrt(H), 1/sqrt(H)).
    Gate order along the 4H axis is PyTorch's [i, f, g, o]."""
    H, I, O = hidden_size, input_size, output_size
    k = 1.0 / math.sqrt(H)
    keys = jax.random.split(key, 10)

    def u(kk, shape):
        return jax.random.uniform(kk, shape, jnp.float32, minval=-k, maxval=k)

    # Weights stored transposed relative to PyTorch (kernel does x @ W).
    wih1 = u(keys[0], (I, 4 * H))
    whh1 = u(keys[1], (H, 4 * H))
    b1 = u(keys[2], (1, 4 * H)) + u(keys[3], (1, 4 * H))   # b_ih + b_hh
    wih2 = u(keys[4], (H, 4 * H))
    whh2 = u(keys[5], (H, 4 * H))
    b2 = u(keys[6], (1, 4 * H)) + u(keys[7], (1, 4 * H))
    wfc = jax.random.uniform(keys[8], (H, O), jnp.float32, minval=-k, maxval=k)
    bfc = jax.random.uniform(keys[9], (1, O), jnp.float32, minval=-k, maxval=k)
    return (wih1, whh1, b1, wih2, whh2, b2, wfc, bfc)


def lstm_forecast(x, params, hidden_size=HIDDEN_SIZE, output_size=OUTPUT_SIZE):
    """x: (B, T, I) batch-first, float32. Returns (B, output_size)."""
    wih1, whh1, b1, wih2, whh2, b2, wfc, bfc = params
    B, T, I = x.shape
    H = hidden_size
    O = output_size

    # --- Wrapper-side weight prep (one-time) ---------------------------------
    # Gate reorder [i,f,g,o] -> [i,f,o,g]; recurrent MXU operands in bf16
    # (accumulation stays f32); fc padded to 128 output lanes.
    win1 = _reorder_gate_cols(wih1).astype(jnp.float32)
    b1_r = _reorder_gate_cols(b1).astype(jnp.float32)
    b2_r = _reorder_gate_cols(b2).astype(jnp.float32)
    whh1_b = _reorder_gate_cols(whh1).astype(jnp.bfloat16)
    wih2_b = _reorder_gate_cols(wih2).astype(jnp.bfloat16)
    whh2_b = _reorder_gate_cols(whh2).astype(jnp.bfloat16)

    Np = 128 * pl.cdiv(O, 128)
    wfc_p = jnp.zeros((H, Np), jnp.float32).at[:, :O].set(wfc)
    bfc_p = jnp.zeros((1, Np), jnp.float32).at[:, :O].set(bfc)

    # --- Batch tiling (pad to sublane count; tile for megacore at large B) ----
    Bp8 = 8 * pl.cdiv(B, 8)
    Bt = min(128, max(8, Bp8))          # batch-tile rows (multiple of 8)
    nb = pl.cdiv(Bp8, Bt)
    Bp = nb * Bt

    x_tm = jnp.transpose(x, (1, 0, 2)).astype(jnp.float32)   # (T, B, I)
    if Bp != B:
        x_tm = jnp.pad(x_tm, ((0, 0), (0, Bp - B), (0, 0)))

    unroll = int(T) if T <= 16 else 4

    out = pl.pallas_call(
        functools.partial(lstm_forecast_kernel, unroll=unroll),
        out_shape=jax.ShapeDtypeStruct((Bp, Np), jnp.float32),
        grid=(nb,),
        in_specs=[
            pl.BlockSpec((T, Bt, I), lambda b: (0, b, 0)),   # x (time-major)
            pl.BlockSpec((I, 4 * H), lambda b: (0, 0)),      # W_ih1
            pl.BlockSpec((1, 4 * H), lambda b: (0, 0)),      # b1
            pl.BlockSpec((H, 4 * H), lambda b: (0, 0)),      # W_hh1 (bf16)
            pl.BlockSpec((H, 4 * H), lambda b: (0, 0)),      # W_ih2 (bf16)
            pl.BlockSpec((H, 4 * H), lambda b: (0, 0)),      # W_hh2 (bf16)
            pl.BlockSpec((1, 4 * H), lambda b: (0, 0)),      # b2
            pl.BlockSpec((H, Np), lambda b: (0, 0)),         # W_fc (padded)
            pl.BlockSpec((1, Np), lambda b: (0, 0)),         # b_fc (padded)
        ],
        out_specs=pl.BlockSpec((Bt, Np), lambda b: (b, 0)),
        compiler_params=pltpu.CompilerParams(
            dimension_semantics=("parallel",),
            vmem_limit_bytes=32 * 1024 * 1024),
    )(x_tm, win1, b1_r, whh1_b, wih2_b, whh2_b, b2_r, wfc_p, bfc_p)
    # TODO(synk): for very long horizons, stream T via a second ("arbitrary")
    # grid axis with h/c in VMEM scratch instead of pinning all of x in VMEM.
    return out[:B, :O]


def lstm_forecast_ref(x, params, hidden_size=HIDDEN_SIZE,
                      matmul_dtype=jnp.float32):
    """Pure-JAX reference (PyTorch gate order). matmul_dtype=bfloat16 mimics the
    kernel's MXU operand precision for the recurrent matmuls (f32 accumulation);
    matmul_dtype=float32 is the exact PyTorch-equivalent forward."""
    wih1, whh1, b1, wih2, whh2, b2, wfc, bfc = params
    B, T, I = x.shape
    H = hidden_size

    def mm(a, w):
        return jnp.dot(a.astype(matmul_dtype), w.astype(matmul_dtype),
                       preferred_element_type=jnp.float32)

    def cell(in_gates, h, c, whh, b):
        gates = in_gates + mm(h, whh) + b
        i = jax.nn.sigmoid(gates[:, 0 * H:1 * H])
        f = jax.nn.sigmoid(gates[:, 1 * H:2 * H])
        g = jnp.tanh(gates[:, 2 * H:3 * H])
        o = jax.nn.sigmoid(gates[:, 3 * H:4 * H])
        c = f * c + i * g
        h = o * jnp.tanh(c)
        return h, c

    h1 = jnp.zeros((B, H), jnp.float32); c1 = jnp.zeros((B, H), jnp.float32)
    h2 = jnp.zeros((B, H), jnp.float32); c2 = jnp.zeros((B, H), jnp.float32)
    for t in range(T):
        x_t = x[:, t, :].astype(jnp.float32)
        h1, c1 = cell(x_t @ wih1, h1, c1, whh1, b1)   # input proj is f32 in kernel
        h2, c2 = cell(mm(h1, wih2), h2, c2, whh2, b2)
    return h2 @ wfc + bfc


if __name__ == "__main__":
    key = jax.random.PRNGKey(0)
    kx, kp = jax.random.split(key)

    B, T = 2, 8
    x = jax.random.normal(kx, (B, T, INPUT_SIZE), dtype=jnp.float32)
    params = init_params(kp)

    out = lstm_forecast(x, params)
    out = jax.block_until_ready(out)
    assert out.shape == (B, OUTPUT_SIZE), out.shape

    # Tight check vs. a reference mimicking the kernel's bf16 MXU operands.
    ref_bf16 = lstm_forecast_ref(x, params, matmul_dtype=jnp.bfloat16)
    assert jnp.allclose(out, ref_bf16, atol=1e-4, rtol=1e-4), (out, ref_bf16)

    # Loose check vs. the full-f32 PyTorch-equivalent reference.
    ref_f32 = lstm_forecast_ref(x, params, matmul_dtype=jnp.float32)
    assert jnp.allclose(out, ref_f32, atol=5e-2, rtol=5e-2), (out, ref_f32)

    print("KERNEL_OK")
</pallas_src>

<mosaic_0001>
module attributes {stable_mosaic.version = 11 : i64} {
  func.func @lstm_forecast_kernel(%arg0: i32, %arg1: memref<8x8x1xf32, #tpu.memory_space<vmem>>, %arg2: memref<1x256xf32, #tpu.memory_space<vmem>>, %arg3: memref<1x256xf32, #tpu.memory_space<vmem>>, %arg4: memref<64x256xbf16, #tpu.memory_space<vmem>>, %arg5: memref<64x256xbf16, #tpu.memory_space<vmem>>, %arg6: memref<64x256xbf16, #tpu.memory_space<vmem>>, %arg7: memref<1x256xf32, #tpu.memory_space<vmem>>, %arg8: memref<64x128xf32, #tpu.memory_space<vmem>>, %arg9: memref<1x128xf32, #tpu.memory_space<vmem>>, %arg10: memref<8x128xf32, #tpu.memory_space<vmem>>) attributes {dimension_semantics = [#tpu.dimension_semantics<parallel>], iteration_bounds = array<i64: 1>, scalar_prefetch = 0 : i64, scratch_operands = 0 : i64, tpu.core_type = #tpu.core_type<tc>, window_params = [{transform_indices = @transform_0, window_bounds = array<i64: 8, 8, 1>}, {pipeline_mode = #tpu.pipeline_mode<synchronous>, transform_indices = @transform_1, window_bounds = array<i64: 1, 256>}, {pipeline_mode = #tpu.pipeline_mode<synchronous>, transform_indices = @transform_2, window_bounds = array<i64: 1, 256>}, {pipeline_mode = #tpu.pipeline_mode<synchronous>, transform_indices = @transform_3, window_bounds = array<i64: 64, 256>}, {pipeline_mode = #tpu.pipeline_mode<synchronous>, transform_indices = @transform_4, window_bounds = array<i64: 64, 256>}, {pipeline_mode = #tpu.pipeline_mode<synchronous>, transform_indices = @transform_5, window_bounds = array<i64: 64, 256>}, {pipeline_mode = #tpu.pipeline_mode<synchronous>, transform_indices = @transform_6, window_bounds = array<i64: 1, 256>}, {pipeline_mode = #tpu.pipeline_mode<synchronous>, transform_indices = @transform_7, window_bounds = array<i64: 64, 128>}, {pipeline_mode = #tpu.pipeline_mode<synchronous>, transform_indices = @transform_8, window_bounds = array<i64: 1, 128>}, {transform_indices = @transform_9, window_bounds = array<i64: 8, 128>}]} {
    %c0 = arith.constant 0 : index
    %c0_0 = arith.constant 0 : index
    %0 = vector.load %arg2[%c0, %c0_0] : memref<1x256xf32, #tpu.memory_space<vmem>>, vector<1x256xf32>
    %1 = vector.shape_cast %0 : vector<1x256xf32> to vector<1x256xf32>
    %2 = vector.broadcast %1 : vector<1x256xf32> to vector<8x256xf32>
    %c0_1 = arith.constant 0 : index
    %c0_2 = arith.constant 0 : index
    %3 = vector.load %arg3[%c0_1, %c0_2] : memref<1x256xf32, #tpu.memory_space<vmem>>, vector<1x256xf32>
    %4 = vector.shape_cast %3 : vector<1x256xf32> to vector<1x256xf32>
    %5 = vector.broadcast %4 : vector<1x256xf32> to vector<8x256xf32>
    %c0_3 = arith.constant 0 : index
    %c0_4 = arith.constant 0 : index
    %6 = vector.load %arg7[%c0_3, %c0_4] : memref<1x256xf32, #tpu.memory_space<vmem>>, vector<1x256xf32>
    %7 = vector.shape_cast %6 : vector<1x256xf32> to vector<1x256xf32>
    %8 = vector.broadcast %7 : vector<1x256xf32> to vector<8x256xf32>
    %cst = arith.constant 0.000000e+00 : f32
    %9 = vector.broadcast %cst : f32 to vector<8x64xf32>
    %c0_i32 = arith.constant 0 : i32
    %10 = arith.truncf %9 : vector<8x64xf32> to vector<8x64xbf16>
    %c0_5 = arith.constant 0 : index
    %c0_6 = arith.constant 0 : index
    %11 = vector.load %arg6[%c0_5, %c0_6] : memref<64x256xbf16, #tpu.memory_space<vmem>>, vector<64x256xbf16>
    %cst_7 = arith.constant dense<0.000000e+00> : vector<8x256xf32>
    %12 = tpu.matmul %10, %11, %cst_7 {dimension_numbers = #tpu.dot_dimension_numbers<[1], [0], [0], [1], [0, 0, 1, 1], [], []>} : vector<8x64xbf16>, vector<64x256xbf16>, vector<8x256xf32> -> vector<8x256xf32>
    %13 = arith.index_cast %c0_i32 : i32 to index
    %c0_8 = arith.constant 0 : index
    %c0_9 = arith.constant 0 : index
    %14 = vector.load %arg1[%13, %c0_8, %c0_9] : memref<8x8x1xf32, #tpu.memory_space<vmem>>, vector<1x8x1xf32>
    %15 = vector.shape_cast %14 : vector<1x8x1xf32> to vector<8x1xf32>
    %16 = vector.broadcast %15 : vector<8x1xf32> to vector<8x256xf32>
    %17 = arith.mulf %16, %2 : vector<8x256xf32>
    %18 = arith.addf %5, %17 : vector<8x256xf32>
    %19 = arith.truncf %9 : vector<8x64xf32> to vector<8x64xbf16>
    %c0_10 = arith.constant 0 : index
    %c0_11 = arith.constant 0 : index
    %20 = vector.load %arg4[%c0_10, %c0_11] : memref<64x256xbf16, #tpu.memory_space<vmem>>, vector<64x256xbf16>
    %cst_12 = arith.constant dense<0.000000e+00> : vector<8x256xf32>
    %21 = tpu.matmul %19, %20, %cst_12 {dimension_numbers = #tpu.dot_dimension_numbers<[1], [0], [0], [1], [0, 0, 1, 1], [], []>} : vector<8x64xbf16>, vector<64x256xbf16>, vector<8x256xf32> -> vector<8x256xf32>
    %22 = arith.addf %18, %21 : vector<8x256xf32>
    %23 = vector.extract_strided_slice %22 {offsets = [0, 0], sizes = [8, 192], strides = [1, 1]} : vector<8x256xf32> to vector<8x192xf32>
    %24 = arith.negf %23 : vector<8x192xf32>
    %25 = math.exp %24 : vector<8x192xf32>
    %cst_13 = arith.constant 1.000000e+00 : f32
    %26 = vector.broadcast %cst_13 : f32 to vector<8x192xf32>
    %27 = arith.addf %26, %25 : vector<8x192xf32>
    %28 = arith.divf %26, %27 : vector<8x192xf32>
    %29 = vector.extract_strided_slice %22 {offsets = [0, 192], sizes = [8, 64], strides = [1, 1]} : vector<8x256xf32> to vector<8x64xf32>
    %30 = math.tanh %29 : vector<8x64xf32>
    %31 = vector.extract_strided_slice %28 {offsets = [0, 0], sizes = [8, 64], strides = [1, 1]} : vector<8x192xf32> to vector<8x64xf32>
    %32 = vector.extract_strided_slice %28 {offsets = [0, 64], sizes = [8, 64], strides = [1, 1]} : vector<8x192xf32> to vector<8x64xf32>
    %33 = vector.extract_strided_slice %28 {offsets = [0, 128], sizes = [8, 64], strides = [1, 1]} : vector<8x192xf32> to vector<8x64xf32>
    %34 = arith.mulf %32, %9 : vector<8x64xf32>
    %35 = arith.mulf %31, %30 : vector<8x64xf32>
    %36 = arith.addf %34, %35 : vector<8x64xf32>
    %37 = math.tanh %36 : vector<8x64xf32>
    %38 = arith.mulf %33, %37 : vector<8x64xf32>
    %39 = arith.addf %12, %8 : vector<8x256xf32>
    %40 = arith.truncf %38 : vector<8x64xf32> to vector<8x64xbf16>
    %c0_14 = arith.constant 0 : index
    %c0_15 = arith.constant 0 : index
    %41 = vector.load %arg5[%c0_14, %c0_15] : memref<64x256xbf16, #tpu.memory_space<vmem>>, vector<64x256xbf16>
    %cst_16 = arith.constant dense<0.000000e+00> : vector<8x256xf32>
    %42 = tpu.matmul %40, %41, %cst_16 {dimension_numbers = #tpu.dot_dimension_numbers<[1], [0], [0], [1], [0, 0, 1, 1], [], []>} : vector<8x64xbf16>, vector<64x256xbf16>, vector<8x256xf32> -> vector<8x256xf32>
    %43 = arith.addf %39, %42 : vector<8x256xf32>
    %44 = vector.extract_strided_slice %43 {offsets = [0, 0], sizes = [8, 192], strides = [1, 1]} : vector<8x256xf32> to vector<8x192xf32>
    %45 = arith.negf %44 : vector<8x192xf32>
    %46 = math.exp %45 : vector<8x192xf32>
    %cst_17 = arith.constant 1.000000e+00 : f32
    %47 = vector.broadcast %cst_17 : f32 to vector<8x192xf32>
    %48 = arith.addf %47, %46 : vector<8x192xf32>
    %49 = arith.divf %47, %48 : vector<8x192xf32>
    %50 = vector.extract_strided_slice %43 {offsets = [0, 192], sizes = [8, 64], strides = [1, 1]} : vector<8x256xf32> to vector<8x64xf32>
    %51 = math.tanh %50 : vector<8x64xf32>
    %52 = vector.extract_strided_slice %49 {offsets = [0, 0], sizes = [8, 64], strides = [1, 1]} : vector<8x192xf32> to vector<8x64xf32>
    %53 = vector.extract_strided_slice %49 {offsets = [0, 64], sizes = [8, 64], strides = [1, 1]} : vector<8x192xf32> to vector<8x64xf32>
    %54 = vector.extract_strided_slice %49 {offsets = [0, 128], sizes = [8, 64], strides = [1, 1]} : vector<8x192xf32> to vector<8x64xf32>
    %55 = arith.mulf %53, %9 : vector<8x64xf32>
    %56 = arith.mulf %52, %51 : vector<8x64xf32>
    %57 = arith.addf %55, %56 : vector<8x64xf32>
    %58 = math.tanh %57 : vector<8x64xf32>
    %59 = arith.mulf %54, %58 : vector<8x64xf32>
    %c1_i32 = arith.constant 1 : i32
    %60 = arith.truncf %59 : vector<8x64xf32> to vector<8x64xbf16>
    %c0_18 = arith.constant 0 : index
    %c0_19 = arith.constant 0 : index
    %61 = vector.load %arg6[%c0_18, %c0_19] : memref<64x256xbf16, #tpu.memory_space<vmem>>, vector<64x256xbf16>
    %cst_20 = arith.constant dense<0.000000e+00> : vector<8x256xf32>
    %62 = tpu.matmul %60, %61, %cst_20 {dimension_numbers = #tpu.dot_dimension_numbers<[1], [0], [0], [1], [0, 0, 1, 1], [], []>} : vector<8x64xbf16>, vector<64x256xbf16>, vector<8x256xf32> -> vector<8x256xf32>
    %63 = arith.index_cast %c1_i32 : i32 to index
    %c0_21 = arith.constant 0 : index
    %c0_22 = arith.constant 0 : index
    %64 = vector.load %arg1[%63, %c0_21, %c0_22] : memref<8x8x1xf32, #tpu.memory_space<vmem>>, vector<1x8x1xf32>
    %65 = vector.shape_cast %64 : vector<1x8x1xf32> to vector<8x1xf32>
    %66 = vector.broadcast %65 : vector<8x1xf32> to vector<8x256xf32>
    %67 = arith.mulf %66, %2 : vector<8x256xf32>
    %68 = arith.addf %5, %67 : vector<8x256xf32>
    %69 = arith.truncf %38 : vector<8x64xf32> to vector<8x64xbf16>
    %c0_23 = arith.constant 0 : index
    %c0_24 = arith.constant 0 : index
    %70 = vector.load %arg4[%c0_23, %c0_24] : memref<64x256xbf16, #tpu.memory_space<vmem>>, vector<64x256xbf16>
    %cst_25 = arith.constant dense<0.000000e+00> : vector<8x256xf32>
    %71 = tpu.matmul %69, %70, %cst_25 {dimension_numbers = #tpu.dot_dimension_numbers<[1], [0], [0], [1], [0, 0, 1, 1], [], []>} : vector<8x64xbf16>, vector<64x256xbf16>, vector<8x256xf32> -> vector<8x256xf32>
    %72 = arith.addf %68, %71 : vector<8x256xf32>
    %73 = vector.extract_strided_slice %72 {offsets = [0, 0], sizes = [8, 192], strides = [1, 1]} : vector<8x256xf32> to vector<8x192xf32>
    %74 = arith.negf %73 : vector<8x192xf32>
    %75 = math.exp %74 : vector<8x192xf32>
    %cst_26 = arith.constant 1.000000e+00 : f32
    %76 = vector.broadcast %cst_26 : f32 to vector<8x192xf32>
    %77 = arith.addf %76, %75 : vector<8x192xf32>
    %78 = arith.divf %76, %77 : vector<8x192xf32>
    %79 = vector.extract_strided_slice %72 {offsets = [0, 192], sizes = [8, 64], strides = [1, 1]} : vector<8x256xf32> to vector<8x64xf32>
    %80 = math.tanh %79 : vector<8x64xf32>
    %81 = vector.extract_strided_slice %78 {offsets = [0, 0], sizes = [8, 64], strides = [1, 1]} : vector<8x192xf32> to vector<8x64xf32>
    %82 = vector.extract_strided_slice %78 {offsets = [0, 64], sizes = [8, 64], strides = [1, 1]} : vector<8x192xf32> to vector<8x64xf32>
    %83 = vector.extract_strided_slice %78 {offsets = [0, 128], sizes = [8, 64], strides = [1, 1]} : vector<8x192xf32> to vector<8x64xf32>
    %84 = arith.mulf %82, %36 : vector<8x64xf32>
    %85 = arith.mulf %81, %80 : vector<8x64xf32>
    %86 = arith.addf %84, %85 : vector<8x64xf32>
    %87 = math.tanh %86 : vector<8x64xf32>
    %88 = arith.mulf %83, %87 : vector<8x64xf32>
    %89 = arith.addf %62, %8 : vector<8x256xf32>
    %90 = arith.truncf %88 : vector<8x64xf32> to vector<8x64xbf16>
    %c0_27 = arith.constant 0 : index
    %c0_28 = arith.constant 0 : index
    %91 = vector.load %arg5[%c0_27, %c0_28] : memref<64x256xbf16, #tpu.memory_space<vmem>>, vector<64x256xbf16>
    %cst_29 = arith.constant dense<0.000000e+00> : vector<8x256xf32>
    %92 = tpu.matmul %90, %91, %cst_29 {dimension_numbers = #tpu.dot_dimension_numbers<[1], [0], [0], [1], [0, 0, 1, 1], [], []>} : vector<8x64xbf16>, vector<64x256xbf16>, vector<8x256xf32> -> vector<8x256xf32>
    %93 = arith.addf %89, %92 : vector<8x256xf32>
    %94 = vector.extract_strided_slice %93 {offsets = [0, 0], sizes = [8, 192], strides = [1, 1]} : vector<8x256xf32> to vector<8x192xf32>
    %95 = arith.negf %94 : vector<8x192xf32>
    %96 = math.exp %95 : vector<8x192xf32>
    %cst_30 = arith.constant 1.000000e+00 : f32
    %97 = vector.broadcast %cst_30 : f32 to vector<8x192xf32>
    %98 = arith.addf %97, %96 : vector<8x192xf32>
    %99 = arith.divf %97, %98 : vector<8x192xf32>
    %100 = vector.extract_strided_slice %93 {offsets = [0, 192], sizes = [8, 64], strides = [1, 1]} : vector<8x256xf32> to vector<8x64xf32>
    %101 = math.tanh %100 : vector<8x64xf32>
    %102 = vector.extract_strided_slice %99 {offsets = [0, 0], sizes = [8, 64], strides = [1, 1]} : vector<8x192xf32> to vector<8x64xf32>
    %103 = vector.extract_strided_slice %99 {offsets = [0, 64], sizes = [8, 64], strides = [1, 1]} : vector<8x192xf32> to vector<8x64xf32>
    %104 = vector.extract_strided_slice %99 {offsets = [0, 128], sizes = [8, 64], strides = [1, 1]} : vector<8x192xf32> to vector<8x64xf32>
    %105 = arith.mulf %103, %57 : vector<8x64xf32>
    %106 = arith.mulf %102, %101 : vector<8x64xf32>
    %107 = arith.addf %105, %106 : vector<8x64xf32>
    %108 = math.tanh %107 : vector<8x64xf32>
    %109 = arith.mulf %104, %108 : vector<8x64xf32>
    %c2_i32 = arith.constant 2 : i32
    %110 = arith.truncf %109 : vector<8x64xf32> to vector<8x64xbf16>
    %c0_31 = arith.constant 0 : index
    %c0_32 = arith.constant 0 : index
    %111 = vector.load %arg6[%c0_31, %c0_32] : memref<64x256xbf16, #tpu.memory_space<vmem>>, vector<64x256xbf16>
    %cst_33 = arith.constant dense<0.000000e+00> : vector<8x256xf32>
    %112 = tpu.matmul %110, %111, %cst_33 {dimension_numbers = #tpu.dot_dimension_numbers<[1], [0], [0], [1], [0, 0, 1, 1], [], []>} : vector<8x64xbf16>, vector<64x256xbf16>, vector<8x256xf32> -> vector<8x256xf32>
    %113 = arith.index_cast %c2_i32 : i32 to index
    %c0_34 = arith.constant 0 : index
    %c0_35 = arith.constant 0 : index
    %114 = vector.load %arg1[%113, %c0_34, %c0_35] : memref<8x8x1xf32, #tpu.memory_space<vmem>>, vector<1x8x1xf32>
    %115 = vector.shape_cast %114 : vector<1x8x1xf32> to vector<8x1xf32>
    %116 = vector.broadcast %115 : vector<8x1xf32> to vector<8x256xf32>
    %117 = arith.mulf %116, %2 : vector<8x256xf32>
    %118 = arith.addf %5, %117 : vector<8x256xf32>
    %119 = arith.truncf %88 : vector<8x64xf32> to vector<8x64xbf16>
    %c0_36 = arith.constant 0 : index
    %c0_37 = arith.constant 0 : index
    %120 = vector.load %arg4[%c0_36, %c0_37] : memref<64x256xbf16, #tpu.memory_space<vmem>>, vector<64x256xbf16>
    %cst_38 = arith.constant dense<0.000000e+00> : vector<8x256xf32>
    %121 = tpu.matmul %119, %120, %cst_38 {dimension_numbers = #tpu.dot_dimension_numbers<[1], [0], [0], [1], [0, 0, 1, 1], [], []>} : vector<8x64xbf16>, vector<64x256xbf16>, vector<8x256xf32> -> vector<8x256xf32>
    %122 = arith.addf %118, %121 : vector<8x256xf32>
    %123 = vector.extract_strided_slice %122 {offsets = [0, 0], sizes = [8, 192], strides = [1, 1]} : vector<8x256xf32> to vector<8x192xf32>
    %124 = arith.negf %123 : vector<8x192xf32>
    %125 = math.exp %124 : vector<8x192xf32>
    %cst_39 = arith.constant 1.000000e+00 : f32
    %126 = vector.broadcast %cst_39 : f32 to vector<8x192xf32>
    %127 = arith.addf %126, %125 : vector<8x192xf32>
    %128 = arith.divf %126, %127 : vector<8x192xf32>
    %129 = vector.extract_strided_slice %122 {offsets = [0, 192], sizes = [8, 64], strides = [1, 1]} : vector<8x256xf32> to vector<8x64xf32>
    %130 = math.tanh %129 : vector<8x64xf32>
    %131 = vector.extract_strided_slice %128 {offsets = [0, 0], sizes = [8, 64], strides = [1, 1]} : vector<8x192xf32> to vector<8x64xf32>
    %132 = vector.extract_strided_slice %128 {offsets = [0, 64], sizes = [8, 64], strides = [1, 1]} : vector<8x192xf32> to vector<8x64xf32>
    %133 = vector.extract_strided_slice %128 {offsets = [0, 128], sizes = [8, 64], strides = [1, 1]} : vector<8x192xf32> to vector<8x64xf32>
    %134 = arith.mulf %132, %86 : vector<8x64xf32>
    %135 = arith.mulf %131, %130 : vector<8x64xf32>
    %136 = arith.addf %134, %135 : vector<8x64xf32>
    %137 = math.tanh %136 : vector<8x64xf32>
    %138 = arith.mulf %133, %137 : vector<8x64xf32>
    %139 = arith.addf %112, %8 : vector<8x256xf32>
    %140 = arith.truncf %138 : vector<8x64xf32> to vector<8x64xbf16>
    %c0_40 = arith.constant 0 : index
    %c0_41 = arith.constant 0 : index
    %141 = vector.load %arg5[%c0_40, %c0_41] : memref<64x256xbf16, #tpu.memory_space<vmem>>, vector<64x256xbf16>
    %cst_42 = arith.constant dense<0.000000e+00> : vector<8x256xf32>
    %142 = tpu.matmul %140, %141, %cst_42 {dimension_numbers = #tpu.dot_dimension_numbers<[1], [0], [0], [1], [0, 0, 1, 1], [], []>} : vector<8x64xbf16>, vector<64x256xbf16>, vector<8x256xf32> -> vector<8x256xf32>
    %143 = arith.addf %139, %142 : vector<8x256xf32>
    %144 = vector.extract_strided_slice %143 {offsets = [0, 0], sizes = [8, 192], strides = [1, 1]} : vector<8x256xf32> to vector<8x192xf32>
    %145 = arith.negf %144 : vector<8x192xf32>
    %146 = math.exp %145 : vector<8x192xf32>
    %cst_43 = arith.constant 1.000000e+00 : f32
    %147 = vector.broadcast %cst_43 : f32 to vector<8x192xf32>
    %148 = arith.addf %147, %146 : vector<8x192xf32>
    %149 = arith.divf %147, %148 : vector<8x192xf32>
    %150 = vector.extract_strided_slice %143 {offsets = [0, 192], sizes = [8, 64], strides = [1, 1]} : vector<8x256xf32> to vector<8x64xf32>
    %151 = math.tanh %150 : vector<8x64xf32>
    %152 = vector.extract_strided_slice %149 {offsets = [0, 0], sizes = [8, 64], strides = [1, 1]} : vector<8x192xf32> to vector<8x64xf32>
    %153 = vector.extract_strided_slice %149 {offsets = [0, 64], sizes = [8, 64], strides = [1, 1]} : vector<8x192xf32> to vector<8x64xf32>
    %154 = vector.extract_strided_slice %149 {offsets = [0, 128], sizes = [8, 64], strides = [1, 1]} : vector<8x192xf32> to vector<8x64xf32>
    %155 = arith.mulf %153, %107 : vector<8x64xf32>
    %156 = arith.mulf %152, %151 : vector<8x64xf32>
    %157 = arith.addf %155, %156 : vector<8x64xf32>
    %158 = math.tanh %157 : vector<8x64xf32>
    %159 = arith.mulf %154, %158 : vector<8x64xf32>
    %c3_i32 = arith.constant 3 : i32
    %160 = arith.truncf %159 : vector<8x64xf32> to vector<8x64xbf16>
    %c0_44 = arith.constant 0 : index
    %c0_45 = arith.constant 0 : index
    %161 = vector.load %arg6[%c0_44, %c0_45] : memref<64x256xbf16, #tpu.memory_space<vmem>>, vector<64x256xbf16>
    %cst_46 = arith.constant dense<0.000000e+00> : vector<8x256xf32>
    %162 = tpu.matmul %160, %161, %cst_46 {dimension_numbers = #tpu.dot_dimension_numbers<[1], [0], [0], [1], [0, 0, 1, 1], [], []>} : vector<8x64xbf16>, vector<64x256xbf16>, vector<8x256xf32> -> vector<8x256xf32>
    %163 = arith.index_cast %c3_i32 : i32 to index
    %c0_47 = arith.constant 0 : index
    %c0_48 = arith.constant 0 : index
    %164 = vector.load %arg1[%163, %c0_47, %c0_48] : memref<8x8x1xf32, #tpu.memory_space<vmem>>, vector<1x8x1xf32>
    %165 = vector.shape_cast %164 : vector<1x8x1xf32> to vector<8x1xf32>
    %166 = vector.broadcast %165 : vector<8x1xf32> to vector<8x256xf32>
    %167 = arith.mulf %166, %2 : vector<8x256xf32>
    %168 = arith.addf %5, %167 : vector<8x256xf32>
    %169 = arith.truncf %138 : vector<8x64xf32> to vector<8x64xbf16>
    %c0_49 = arith.constant 0 : index
    %c0_50 = arith.constant 0 : index
    %170 = vector.load %arg4[%c0_49, %c0_50] : memref<64x256xbf16, #tpu.memory_space<vmem>>, vector<64x256xbf16>
    %cst_51 = arith.constant dense<0.000000e+00> : vector<8x256xf32>
    %171 = tpu.matmul %169, %170, %cst_51 {dimension_numbers = #tpu.dot_dimension_numbers<[1], [0], [0], [1], [0, 0, 1, 1], [], []>} : vector<8x64xbf16>, vector<64x256xbf16>, vector<8x256xf32> -> vector<8x256xf32>
    %172 = arith.addf %168, %171 : vector<8x256xf32>
    %173 = vector.extract_strided_slice %172 {offsets = [0, 0], sizes = [8, 192], strides = [1, 1]} : vector<8x256xf32> to vector<8x192xf32>
    %174 = arith.negf %173 : vector<8x192xf32>
    %175 = math.exp %174 : vector<8x192xf32>
    %cst_52 = arith.constant 1.000000e+00 : f32
    %176 = vector.broadcast %cst_52 : f32 to vector<8x192xf32>
    %177 = arith.addf %176, %175 : vector<8x192xf32>
    %178 = arith.divf %176, %177 : vector<8x192xf32>
    %179 = vector.extract_strided_slice %172 {offsets = [0, 192], sizes = [8, 64], strides = [1, 1]} : vector<8x256xf32> to vector<8x64xf32>
    %180 = math.tanh %179 : vector<8x64xf32>
    %181 = vector.extract_strided_slice %178 {offsets = [0, 0], sizes = [8, 64], strides = [1, 1]} : vector<8x192xf32> to vector<8x64xf32>
    %182 = vector.extract_strided_slice %178 {offsets = [0, 64], sizes = [8, 64], strides = [1, 1]} : vector<8x192xf32> to vector<8x64xf32>
    %183 = vector.extract_strided_slice %178 {offsets = [0, 128], sizes = [8, 64], strides = [1, 1]} : vector<8x192xf32> to vector<8x64xf32>
    %184 = arith.mulf %182, %136 : vector<8x64xf32>
    %185 = arith.mulf %181, %180 : vector<8x64xf32>
    %186 = arith.addf %184, %185 : vector<8x64xf32>
    %187 = math.tanh %186 : vector<8x64xf32>
    %188 = arith.mulf %183, %187 : vector<8x64xf32>
    %189 = arith.addf %162, %8 : vector<8x256xf32>
    %190 = arith.truncf %188 : vector<8x64xf32> to vector<8x64xbf16>
    %c0_53 = arith.constant 0 : index
    %c0_54 = arith.constant 0 : index
    %191 = vector.load %arg5[%c0_53, %c0_54] : memref<64x256xbf16, #tpu.memory_space<vmem>>, vector<64x256xbf16>
    %cst_55 = arith.constant dense<0.000000e+00> : vector<8x256xf32>
    %192 = tpu.matmul %190, %191, %cst_55 {dimension_numbers = #tpu.dot_dimension_numbers<[1], [0], [0], [1], [0, 0, 1, 1], [], []>} : vector<8x64xbf16>, vector<64x256xbf16>, vector<8x256xf32> -> vector<8x256xf32>
    %193 = arith.addf %189, %192 : vector<8x256xf32>
    %194 = vector.extract_strided_slice %193 {offsets = [0, 0], sizes = [8, 192], strides = [1, 1]} : vector<8x256xf32> to vector<8x192xf32>
    %195 = arith.negf %194 : vector<8x192xf32>
    %196 = math.exp %195 : vector<8x192xf32>
    %cst_56 = arith.constant 1.000000e+00 : f32
    %197 = vector.broadcast %cst_56 : f32 to vector<8x192xf32>
    %198 = arith.addf %197, %196 : vector<8x192xf32>
    %199 = arith.divf %197, %198 : vector<8x192xf32>
    %200 = vector.extract_strided_slice %193 {offsets = [0, 192], sizes = [8, 64], strides = [1, 1]} : vector<8x256xf32> to vector<8x64xf32>
    %201 = math.tanh %200 : vector<8x64xf32>
    %202 = vector.extract_strided_slice %199 {offsets = [0, 0], sizes = [8, 64], strides = [1, 1]} : vector<8x192xf32> to vector<8x64xf32>
    %203 = vector.extract_strided_slice %199 {offsets = [0, 64], sizes = [8, 64], strides = [1, 1]} : vector<8x192xf32> to vector<8x64xf32>
    %204 = vector.extract_strided_slice %199 {offsets = [0, 128], sizes = [8, 64], strides = [1, 1]} : vector<8x192xf32> to vector<8x64xf32>
    %205 = arith.mulf %203, %157 : vector<8x64xf32>
    %206 = arith.mulf %202, %201 : vector<8x64xf32>
    %207 = arith.addf %205, %206 : vector<8x64xf32>
    %208 = math.tanh %207 : vector<8x64xf32>
    %209 = arith.mulf %204, %208 : vector<8x64xf32>
    %c4_i32 = arith.constant 4 : i32
    %210 = arith.truncf %209 : vector<8x64xf32> to vector<8x64xbf16>
    %c0_57 = arith.constant 0 : index
    %c0_58 = arith.constant 0 : index
    %211 = vector.load %arg6[%c0_57, %c0_58] : memref<64x256xbf16, #tpu.memory_space<vmem>>, vector<64x256xbf16>
    %cst_59 = arith.constant dense<0.000000e+00> : vector<8x256xf32>
    %212 = tpu.matmul %210, %211, %cst_59 {dimension_numbers = #tpu.dot_dimension_numbers<[1], [0], [0], [1], [0, 0, 1, 1], [], []>} : vector<8x64xbf16>, vector<64x256xbf16>, vector<8x256xf32> -> vector<8x256xf32>
    %213 = arith.index_cast %c4_i32 : i32 to index
    %c0_60 = arith.constant 0 : index
    %c0_61 = arith.constant 0 : index
    %214 = vector.load %arg1[%213, %c0_60, %c0_61] : memref<8x8x1xf32, #tpu.memory_space<vmem>>, vector<1x8x1xf32>
    %215 = vector.shape_cast %214 : vector<1x8x1xf32> to vector<8x1xf32>
    %216 = vector.broadcast %215 : vector<8x1xf32> to vector<8x256xf32>
    %217 = arith.mulf %216, %2 : vector<8x256xf32>
    %218 = arith.addf %5, %217 : vector<8x256xf32>
    %219 = arith.truncf %188 : vector<8x64xf32> to vector<8x64xbf16>
    %c0_62 = arith.constant 0 : index
    %c0_63 = arith.constant 0 : index
    %220 = vector.load %arg4[%c0_62, %c0_63] : memref<64x256xbf16, #tpu.memory_space<vmem>>, vector<64x256xbf16>
    %cst_64 = arith.constant dense<0.000000e+00> : vector<8x256xf32>
    %221 = tpu.matmul %219, %220, %cst_64 {dimension_numbers = #tpu.dot_dimension_numbers<[1], [0], [0], [1], [0, 0, 1, 1], [], []>} : vector<8x64xbf16>, vector<64x256xbf16>, vector<8x256xf32> -> vector<8x256xf32>
    %222 = arith.addf %218, %221 : vector<8x256xf32>
    %223 = vector.extract_strided_slice %222 {offsets = [0, 0], sizes = [8, 192], strides = [1, 1]} : vector<8x256xf32> to vector<8x192xf32>
    %224 = arith.negf %223 : vector<8x192xf32>
    %225 = math.exp %224 : vector<8x192xf32>
    %cst_65 = arith.constant 1.000000e+00 : f32
    %226 = vector.broadcast %cst_65 : f32 to vector<8x192xf32>
    %227 = arith.addf %226, %225 : vector<8x192xf32>
    %228 = arith.divf %226, %227 : vector<8x192xf32>
    %229 = vector.extract_strided_slice %222 {offsets = [0, 192], sizes = [8, 64], strides = [1, 1]} : vector<8x256xf32> to vector<8x64xf32>
    %230 = math.tanh %229 : vector<8x64xf32>
    %231 = vector.extract_strided_slice %228 {offsets = [0, 0], sizes = [8, 64], strides = [1, 1]} : vector<8x192xf32> to vector<8x64xf32>
    %232 = vector.extract_strided_slice %228 {offsets = [0, 64], sizes = [8, 64], strides = [1, 1]} : vector<8x192xf32> to vector<8x64xf32>
    %233 = vector.extract_strided_slice %228 {offsets = [0, 128], sizes = [8, 64], strides = [1, 1]} : vector<8x192xf32> to vector<8x64xf32>
    %234 = arith.mulf %232, %186 : vector<8x64xf32>
    %235 = arith.mulf %231, %230 : vector<8x64xf32>
    %236 = arith.addf %234, %235 : vector<8x64xf32>
    %237 = math.tanh %236 : vector<8x64xf32>
    %238 = arith.mulf %233, %237 : vector<8x64xf32>
    %239 = arith.addf %212, %8 : vector<8x256xf32>
    %240 = arith.truncf %238 : vector<8x64xf32> to vector<8x64xbf16>
    %c0_66 = arith.constant 0 : index
    %c0_67 = arith.constant 0 : index
    %241 = vector.load %arg5[%c0_66, %c0_67] : memref<64x256xbf16, #tpu.memory_space<vmem>>, vector<64x256xbf16>
    %cst_68 = arith.constant dense<0.000000e+00> : vector<8x256xf32>
    %242 = tpu.matmul %240, %241, %cst_68 {dimension_numbers = #tpu.dot_dimension_numbers<[1], [0], [0], [1], [0, 0, 1, 1], [], []>} : vector<8x64xbf16>, vector<64x256xbf16>, vector<8x256xf32> -> vector<8x256xf32>
    %243 = arith.addf %239, %242 : vector<8x256xf32>
    %244 = vector.extract_strided_slice %243 {offsets = [0, 0], sizes = [8, 192], strides = [1, 1]} : vector<8x256xf32> to vector<8x192xf32>
    %245 = arith.negf %244 : vector<8x192xf32>
    %246 = math.exp %245 : vector<8x192xf32>
    %cst_69 = arith.constant 1.000000e+00 : f32
    %247 = vector.broadcast %cst_69 : f32 to vector<8x192xf32>
    %248 = arith.addf %247, %246 : vector<8x192xf32>
    %249 = arith.divf %247, %248 : vector<8x192xf32>
    %250 = vector.extract_strided_slice %243 {offsets = [0, 192], sizes = [8, 64], strides = [1, 1]} : vector<8x256xf32> to vector<8x64xf32>
    %251 = math.tanh %250 : vector<8x64xf32>
    %252 = vector.extract_strided_slice %249 {offsets = [0, 0], sizes = [8, 64], strides = [1, 1]} : vector<8x192xf32> to vector<8x64xf32>
    %253 = vector.extract_strided_slice %249 {offsets = [0, 64], sizes = [8, 64], strides = [1, 1]} : vector<8x192xf32> to vector<8x64xf32>
    %254 = vector.extract_strided_slice %249 {offsets = [0, 128], sizes = [8, 64], strides = [1, 1]} : vector<8x192xf32> to vector<8x64xf32>
    %255 = arith.mulf %253, %207 : vector<8x64xf32>
    %256 = arith.mulf %252, %251 : vector<8x64xf32>
    %257 = arith.addf %255, %256 : vector<8x64xf32>
    %258 = math.tanh %257 : vector<8x64xf32>
    %259 = arith.mulf %254, %258 : vector<8x64xf32>
    %c5_i32 = arith.constant 5 : i32
    %260 = arith.truncf %259 : vector<8x64xf32> to vector<8x64xbf16>
    %c0_70 = arith.constant 0 : index
    %c0_71 = arith.constant 0 : index
    %261 = vector.load %arg6[%c0_70, %c0_71] : memref<64x256xbf16, #tpu.memory_space<vmem>>, vector<64x256xbf16>
    %cst_72 = arith.constant dense<0.000000e+00> : vector<8x256xf32>
    %262 = tpu.matmul %260, %261, %cst_72 {dimension_numbers = #tpu.dot_dimension_numbers<[1], [0], [0], [1], [0, 0, 1, 1], [], []>} : vector<8x64xbf16>, vector<64x256xbf16>, vector<8x256xf32> -> vector<8x256xf32>
    %263 = arith.index_cast %c5_i32 : i32 to index
    %c0_73 = arith.constant 0 : index
    %c0_74 = arith.constant 0 : index
    %264 = vector.load %arg1[%263, %c0_73, %c0_74] : memref<8x8x1xf32, #tpu.memory_space<vmem>>, vector<1x8x1xf32>
    %265 = vector.shape_cast %264 : vector<1x8x1xf32> to vector<8x1xf32>
    %266 = vector.broadcast %265 : vector<8x1xf32> to vector<8x256xf32>
    %267 = arith.mulf %266, %2 : vector<8x256xf32>
    %268 = arith.addf %5, %267 : vector<8x256xf32>
    %269 = arith.truncf %238 : vector<8x64xf32> to vector<8x64xbf16>
    %c0_75 = arith.constant 0 : index
    %c0_76 = arith.constant 0 : index
    %270 = vector.load %arg4[%c0_75, %c0_76] : memref<64x256xbf16, #tpu.memory_space<vmem>>, vector<64x256xbf16>
    %cst_77 = arith.constant dense<0.000000e+00> : vector<8x256xf32>
    %271 = tpu.matmul %269, %270, %cst_77 {dimension_numbers = #tpu.dot_dimension_numbers<[1], [0], [0], [1], [0, 0, 1, 1], [], []>} : vector<8x64xbf16>, vector<64x256xbf16>, vector<8x256xf32> -> vector<8x256xf32>
    %272 = arith.addf %268, %271 : vector<8x256xf32>
    %273 = vector.extract_strided_slice %272 {offsets = [0, 0], sizes = [8, 192], strides = [1, 1]} : vector<8x256xf32> to vector<8x192xf32>
    %274 = arith.negf %273 : vector<8x192xf32>
    %275 = math.exp %274 : vector<8x192xf32>
    %cst_78 = arith.constant 1.000000e+00 : f32
    %276 = vector.broadcast %cst_78 : f32 to vector<8x192xf32>
    %277 = arith.addf %276, %275 : vector<8x192xf32>
    %278 = arith.divf %276, %277 : vector<8x192xf32>
    %279 = vector.extract_strided_slice %272 {offsets = [0, 192], sizes = [8, 64], strides = [1, 1]} : vector<8x256xf32> to vector<8x64xf32>
    %280 = math.tanh %279 : vector<8x64xf32>
    %281 = vector.extract_strided_slice %278 {offsets = [0, 0], sizes = [8, 64], strides = [1, 1]} : vector<8x192xf32> to vector<8x64xf32>
    %282 = vector.extract_strided_slice %278 {offsets = [0, 64], sizes = [8, 64], strides = [1, 1]} : vector<8x192xf32> to vector<8x64xf32>
    %283 = vector.extract_strided_slice %278 {offsets = [0, 128], sizes = [8, 64], strides = [1, 1]} : vector<8x192xf32> to vector<8x64xf32>
    %284 = arith.mulf %282, %236 : vector<8x64xf32>
    %285 = arith.mulf %281, %280 : vector<8x64xf32>
    %286 = arith.addf %284, %285 : vector<8x64xf32>
    %287 = math.tanh %286 : vector<8x64xf32>
    %288 = arith.mulf %283, %287 : vector<8x64xf32>
    %289 = arith.addf %262, %8 : vector<8x256xf32>
    %290 = arith.truncf %288 : vector<8x64xf32> to vector<8x64xbf16>
    %c0_79 = arith.constant 0 : index
    %c0_80 = arith.constant 0 : index
    %291 = vector.load %arg5[%c0_79, %c0_80] : memref<64x256xbf16, #tpu.memory_space<vmem>>, vector<64x256xbf16>
    %cst_81 = arith.constant dense<0.000000e+00> : vector<8x256xf32>
    %292 = tpu.matmul %290, %291, %cst_81 {dimension_numbers = #tpu.dot_dimension_numbers<[1], [0], [0], [1], [0, 0, 1, 1], [], []>} : vector<8x64xbf16>, vector<64x256xbf16>, vector<8x256xf32> -> vector<8x256xf32>
    %293 = arith.addf %289, %292 : vector<8x256xf32>
    %294 = vector.extract_strided_slice %293 {offsets = [0, 0], sizes = [8, 192], strides = [1, 1]} : vector<8x256xf32> to vector<8x192xf32>
    %295 = arith.negf %294 : vector<8x192xf32>
    %296 = math.exp %295 : vector<8x192xf32>
    %cst_82 = arith.constant 1.000000e+00 : f32
    %297 = vector.broadcast %cst_82 : f32 to vector<8x192xf32>
    %298 = arith.addf %297, %296 : vector<8x192xf32>
    %299 = arith.divf %297, %298 : vector<8x192xf32>
    %300 = vector.extract_strided_slice %293 {offsets = [0, 192], sizes = [8, 64], strides = [1, 1]} : vector<8x256xf32> to vector<8x64xf32>
    %301 = math.tanh %300 : vector<8x64xf32>
    %302 = vector.extract_strided_slice %299 {offsets = [0, 0], sizes = [8, 64], strides = [1, 1]} : vector<8x192xf32> to vector<8x64xf32>
    %303 = vector.extract_strided_slice %299 {offsets = [0, 64], sizes = [8, 64], strides = [1, 1]} : vector<8x192xf32> to vector<8x64xf32>
    %304 = vector.extract_strided_slice %299 {offsets = [0, 128], sizes = [8, 64], strides = [1, 1]} : vector<8x192xf32> to vector<8x64xf32>
    %305 = arith.mulf %303, %257 : vector<8x64xf32>
    %306 = arith.mulf %302, %301 : vector<8x64xf32>
    %307 = arith.addf %305, %306 : vector<8x64xf32>
    %308 = math.tanh %307 : vector<8x64xf32>
    %309 = arith.mulf %304, %308 : vector<8x64xf32>
    %c6_i32 = arith.constant 6 : i32
    %310 = arith.truncf %309 : vector<8x64xf32> to vector<8x64xbf16>
    %c0_83 = arith.constant 0 : index
    %c0_84 = arith.constant 0 : index
    %311 = vector.load %arg6[%c0_83, %c0_84] : memref<64x256xbf16, #tpu.memory_space<vmem>>, vector<64x256xbf16>
    %cst_85 = arith.constant dense<0.000000e+00> : vector<8x256xf32>
    %312 = tpu.matmul %310, %311, %cst_85 {dimension_numbers = #tpu.dot_dimension_numbers<[1], [0], [0], [1], [0, 0, 1, 1], [], []>} : vector<8x64xbf16>, vector<64x256xbf16>, vector<8x256xf32> -> vector<8x256xf32>
    %313 = arith.index_cast %c6_i32 : i32 to index
    %c0_86 = arith.constant 0 : index
    %c0_87 = arith.constant 0 : index
    %314 = vector.load %arg1[%313, %c0_86, %c0_87] : memref<8x8x1xf32, #tpu.memory_space<vmem>>, vector<1x8x1xf32>
    %315 = vector.shape_cast %314 : vector<1x8x1xf32> to vector<8x1xf32>
    %316 = vector.broadcast %315 : vector<8x1xf32> to vector<8x256xf32>
    %317 = arith.mulf %316, %2 : vector<8x256xf32>
    %318 = arith.addf %5, %317 : vector<8x256xf32>
    %319 = arith.truncf %288 : vector<8x64xf32> to vector<8x64xbf16>
    %c0_88 = arith.constant 0 : index
    %c0_89 = arith.constant 0 : index
    %320 = vector.load %arg4[%c0_88, %c0_89] : memref<64x256xbf16, #tpu.memory_space<vmem>>, vector<64x256xbf16>
    %cst_90 = arith.constant dense<0.000000e+00> : vector<8x256xf32>
    %321 = tpu.matmul %319, %320, %cst_90 {dimension_numbers = #tpu.dot_dimension_numbers<[1], [0], [0], [1], [0, 0, 1, 1], [], []>} : vector<8x64xbf16>, vector<64x256xbf16>, vector<8x256xf32> -> vector<8x256xf32>
    %322 = arith.addf %318, %321 : vector<8x256xf32>
    %323 = vector.extract_strided_slice %322 {offsets = [0, 0], sizes = [8, 192], strides = [1, 1]} : vector<8x256xf32> to vector<8x192xf32>
    %324 = arith.negf %323 : vector<8x192xf32>
    %325 = math.exp %324 : vector<8x192xf32>
    %cst_91 = arith.constant 1.000000e+00 : f32
    %326 = vector.broadcast %cst_91 : f32 to vector<8x192xf32>
    %327 = arith.addf %326, %325 : vector<8x192xf32>
    %328 = arith.divf %326, %327 : vector<8x192xf32>
    %329 = vector.extract_strided_slice %322 {offsets = [0, 192], sizes = [8, 64], strides = [1, 1]} : vector<8x256xf32> to vector<8x64xf32>
    %330 = math.tanh %329 : vector<8x64xf32>
    %331 = vector.extract_strided_slice %328 {offsets = [0, 0], sizes = [8, 64], strides = [1, 1]} : vector<8x192xf32> to vector<8x64xf32>
    %332 = vector.extract_strided_slice %328 {offsets = [0, 64], sizes = [8, 64], strides = [1, 1]} : vector<8x192xf32> to vector<8x64xf32>
    %333 = vector.extract_strided_slice %328 {offsets = [0, 128], sizes = [8, 64], strides = [1, 1]} : vector<8x192xf32> to vector<8x64xf32>
    %334 = arith.mulf %332, %286 : vector<8x64xf32>
    %335 = arith.mulf %331, %330 : vector<8x64xf32>
    %336 = arith.addf %334, %335 : vector<8x64xf32>
    %337 = math.tanh %336 : vector<8x64xf32>
    %338 = arith.mulf %333, %337 : vector<8x64xf32>
    %339 = arith.addf %312, %8 : vector<8x256xf32>
    %340 = arith.truncf %338 : vector<8x64xf32> to vector<8x64xbf16>
    %c0_92 = arith.constant 0 : index
    %c0_93 = arith.constant 0 : index
    %341 = vector.load %arg5[%c0_92, %c0_93] : memref<64x256xbf16, #tpu.memory_space<vmem>>, vector<64x256xbf16>
    %cst_94 = arith.constant dense<0.000000e+00> : vector<8x256xf32>
    %342 = tpu.matmul %340, %341, %cst_94 {dimension_numbers = #tpu.dot_dimension_numbers<[1], [0], [0], [1], [0, 0, 1, 1], [], []>} : vector<8x64xbf16>, vector<64x256xbf16>, vector<8x256xf32> -> vector<8x256xf32>
    %343 = arith.addf %339, %342 : vector<8x256xf32>
    %344 = vector.extract_strided_slice %343 {offsets = [0, 0], sizes = [8, 192], strides = [1, 1]} : vector<8x256xf32> to vector<8x192xf32>
    %345 = arith.negf %344 : vector<8x192xf32>
    %346 = math.exp %345 : vector<8x192xf32>
    %cst_95 = arith.constant 1.000000e+00 : f32
    %347 = vector.broadcast %cst_95 : f32 to vector<8x192xf32>
    %348 = arith.addf %347, %346 : vector<8x192xf32>
    %349 = arith.divf %347, %348 : vector<8x192xf32>
    %350 = vector.extract_strided_slice %343 {offsets = [0, 192], sizes = [8, 64], strides = [1, 1]} : vector<8x256xf32> to vector<8x64xf32>
    %351 = math.tanh %350 : vector<8x64xf32>
    %352 = vector.extract_strided_slice %349 {offsets = [0, 0], sizes = [8, 64], strides = [1, 1]} : vector<8x192xf32> to vector<8x64xf32>
    %353 = vector.extract_strided_slice %349 {offsets = [0, 64], sizes = [8, 64], strides = [1, 1]} : vector<8x192xf32> to vector<8x64xf32>
    %354 = vector.extract_strided_slice %349 {offsets = [0, 128], sizes = [8, 64], strides = [1, 1]} : vector<8x192xf32> to vector<8x64xf32>
    %355 = arith.mulf %353, %307 : vector<8x64xf32>
    %356 = arith.mulf %352, %351 : vector<8x64xf32>
    %357 = arith.addf %355, %356 : vector<8x64xf32>
    %358 = math.tanh %357 : vector<8x64xf32>
    %359 = arith.mulf %354, %358 : vector<8x64xf32>
    %c7_i32 = arith.constant 7 : i32
    %360 = arith.truncf %359 : vector<8x64xf32> to vector<8x64xbf16>
    %c0_96 = arith.constant 0 : index
    %c0_97 = arith.constant 0 : index
    %361 = vector.load %arg6[%c0_96, %c0_97] : memref<64x256xbf16, #tpu.memory_space<vmem>>, vector<64x256xbf16>
    %cst_98 = arith.constant dense<0.000000e+00> : vector<8x256xf32>
    %362 = tpu.matmul %360, %361, %cst_98 {dimension_numbers = #tpu.dot_dimension_numbers<[1], [0], [0], [1], [0, 0, 1, 1], [], []>} : vector<8x64xbf16>, vector<64x256xbf16>, vector<8x256xf32> -> vector<8x256xf32>
    %363 = arith.index_cast %c7_i32 : i32 to index
    %c0_99 = arith.constant 0 : index
    %c0_100 = arith.constant 0 : index
    %364 = vector.load %arg1[%363, %c0_99, %c0_100] : memref<8x8x1xf32, #tpu.memory_space<vmem>>, vector<1x8x1xf32>
    %365 = vector.shape_cast %364 : vector<1x8x1xf32> to vector<8x1xf32>
    %366 = vector.broadcast %365 : vector<8x1xf32> to vector<8x256xf32>
    %367 = arith.mulf %366, %2 : vector<8x256xf32>
    %368 = arith.addf %5, %367 : vector<8x256xf32>
    %369 = arith.truncf %338 : vector<8x64xf32> to vector<8x64xbf16>
    %c0_101 = arith.constant 0 : index
    %c0_102 = arith.constant 0 : index
    %370 = vector.load %arg4[%c0_101, %c0_102] : memref<64x256xbf16, #tpu.memory_space<vmem>>, vector<64x256xbf16>
    %cst_103 = arith.constant dense<0.000000e+00> : vector<8x256xf32>
    %371 = tpu.matmul %369, %370, %cst_103 {dimension_numbers = #tpu.dot_dimension_numbers<[1], [0], [0], [1], [0, 0, 1, 1], [], []>} : vector<8x64xbf16>, vector<64x256xbf16>, vector<8x256xf32> -> vector<8x256xf32>
    %372 = arith.addf %368, %371 : vector<8x256xf32>
    %373 = vector.extract_strided_slice %372 {offsets = [0, 0], sizes = [8, 192], strides = [1, 1]} : vector<8x256xf32> to vector<8x192xf32>
    %374 = arith.negf %373 : vector<8x192xf32>
    %375 = math.exp %374 : vector<8x192xf32>
    %cst_104 = arith.constant 1.000000e+00 : f32
    %376 = vector.broadcast %cst_104 : f32 to vector<8x192xf32>
    %377 = arith.addf %376, %375 : vector<8x192xf32>
    %378 = arith.divf %376, %377 : vector<8x192xf32>
    %379 = vector.extract_strided_slice %372 {offsets = [0, 192], sizes = [8, 64], strides = [1, 1]} : vector<8x256xf32> to vector<8x64xf32>
    %380 = math.tanh %379 : vector<8x64xf32>
    %381 = vector.extract_strided_slice %378 {offsets = [0, 0], sizes = [8, 64], strides = [1, 1]} : vector<8x192xf32> to vector<8x64xf32>
    %382 = vector.extract_strided_slice %378 {offsets = [0, 64], sizes = [8, 64], strides = [1, 1]} : vector<8x192xf32> to vector<8x64xf32>
    %383 = vector.extract_strided_slice %378 {offsets = [0, 128], sizes = [8, 64], strides = [1, 1]} : vector<8x192xf32> to vector<8x64xf32>
    %384 = arith.mulf %382, %336 : vector<8x64xf32>
    %385 = arith.mulf %381, %380 : vector<8x64xf32>
    %386 = arith.addf %384, %385 : vector<8x64xf32>
    %387 = math.tanh %386 : vector<8x64xf32>
    %388 = arith.mulf %383, %387 : vector<8x64xf32>
    %389 = arith.addf %362, %8 : vector<8x256xf32>
    %390 = arith.truncf %388 : vector<8x64xf32> to vector<8x64xbf16>
    %c0_105 = arith.constant 0 : index
    %c0_106 = arith.constant 0 : index
    %391 = vector.load %arg5[%c0_105, %c0_106] : memref<64x256xbf16, #tpu.memory_space<vmem>>, vector<64x256xbf16>
    %cst_107 = arith.constant dense<0.000000e+00> : vector<8x256xf32>
    %392 = tpu.matmul %390, %391, %cst_107 {dimension_numbers = #tpu.dot_dimension_numbers<[1], [0], [0], [1], [0, 0, 1, 1], [], []>} : vector<8x64xbf16>, vector<64x256xbf16>, vector<8x256xf32> -> vector<8x256xf32>
    %393 = arith.addf %389, %392 : vector<8x256xf32>
    %394 = vector.extract_strided_slice %393 {offsets = [0, 0], sizes = [8, 192], strides = [1, 1]} : vector<8x256xf32> to vector<8x192xf32>
    %395 = arith.negf %394 : vector<8x192xf32>
    %396 = math.exp %395 : vector<8x192xf32>
    %cst_108 = arith.constant 1.000000e+00 : f32
    %397 = vector.broadcast %cst_108 : f32 to vector<8x192xf32>
    %398 = arith.addf %397, %396 : vector<8x192xf32>
    %399 = arith.divf %397, %398 : vector<8x192xf32>
    %400 = vector.extract_strided_slice %393 {offsets = [0, 192], sizes = [8, 64], strides = [1, 1]} : vector<8x256xf32> to vector<8x64xf32>
    %401 = math.tanh %400 : vector<8x64xf32>
    %402 = vector.extract_strided_slice %399 {offsets = [0, 0], sizes = [8, 64], strides = [1, 1]} : vector<8x192xf32> to vector<8x64xf32>
    %403 = vector.extract_strided_slice %399 {offsets = [0, 64], sizes = [8, 64], strides = [1, 1]} : vector<8x192xf32> to vector<8x64xf32>
    %404 = vector.extract_strided_slice %399 {offsets = [0, 128], sizes = [8, 64], strides = [1, 1]} : vector<8x192xf32> to vector<8x64xf32>
    %405 = arith.mulf %403, %357 : vector<8x64xf32>
    %406 = arith.mulf %402, %401 : vector<8x64xf32>
    %407 = arith.addf %405, %406 : vector<8x64xf32>
    %408 = math.tanh %407 : vector<8x64xf32>
    %409 = arith.mulf %404, %408 : vector<8x64xf32>
    %c8_i32 = arith.constant 8 : i32
    %c0_109 = arith.constant 0 : index
    %c0_110 = arith.constant 0 : index
    %410 = vector.load %arg8[%c0_109, %c0_110] : memref<64x128xf32, #tpu.memory_space<vmem>>, vector<64x128xf32>
    %cst_111 = arith.constant dense<0.000000e+00> : vector<8x128xf32>
    %411 = tpu.matmul %409, %410, %cst_111 {dimension_numbers = #tpu.dot_dimension_numbers<[1], [0], [0], [1], [0, 0, 1, 1], [], []>} : vector<8x64xf32>, vector<64x128xf32>, vector<8x128xf32> -> vector<8x128xf32>
    %c0_112 = arith.constant 0 : index
    %c0_113 = arith.constant 0 : index
    %412 = vector.load %arg9[%c0_112, %c0_113] : memref<1x128xf32, #tpu.memory_space<vmem>>, vector<1x128xf32>
    %413 = vector.broadcast %412 : vector<1x128xf32> to vector<8x128xf32>
    %414 = arith.addf %411, %413 : vector<8x128xf32>
    %c0_114 = arith.constant 0 : index
    %c0_115 = arith.constant 0 : index
    %415 = vector.load %arg10[%c0_114, %c0_115] : memref<8x128xf32, #tpu.memory_space<vmem>>, vector<8x128xf32>
    tpu.vector_store %arg10[%c0_114, %c0_115], %414 {strides = array<i32>} : memref<8x128xf32, #tpu.memory_space<vmem>>, vector<8x128xf32>,
    return
  }
  func.func @transform_0(%arg0: i32) -> (i32, i32, i32) {
    %c0_i32 = arith.constant 0 : i32
    %c0_i32_0 = arith.constant 0 : i32
    %c0_i32_1 = arith.constant 0 : i32
    return %c0_i32, %arg0, %c0_i32_0 : i32, i32, i32
  }
  func.func @transform_1(%arg0: i32) -> (i32, i32) {
    %c0_i32 = arith.constant 0 : i32
    %c0_i32_0 = arith.constant 0 : i32
    %c0_i32_1 = arith.constant 0 : i32
    return %c0_i32, %c0_i32_0 : i32, i32
  }
  func.func @transform_2(%arg0: i32) -> (i32, i32) {
    %c0_i32 = arith.constant 0 : i32
    %c0_i32_0 = arith.constant 0 : i32
    %c0_i32_1 = arith.constant 0 : i32
    return %c0_i32, %c0_i32_0 : i32, i32
  }
  func.func @transform_3(%arg0: i32) -> (i32, i32) {
    %c0_i32 = arith.constant 0 : i32
    %c0_i32_0 = arith.constant 0 : i32
    %c0_i32_1 = arith.constant 0 : i32
    return %c0_i32, %c0_i32_0 : i32, i32
  }
  func.func @transform_4(%arg0: i32) -> (i32, i32) {
    %c0_i32 = arith.constant 0 : i32
    %c0_i32_0 = arith.constant 0 : i32
    %c0_i32_1 = arith.constant 0 : i32
    return %c0_i32, %c0_i32_0 : i32, i32
  }
  func.func @transform_5(%arg0: i32) -> (i32, i32) {
    %c0_i32 = arith.constant 0 : i32
    %c0_i32_0 = arith.constant 0 : i32
    %c0_i32_1 = arith.constant 0 : i32
    return %c0_i32, %c0_i32_0 : i32, i32
  }
  func.func @transform_6(%arg0: i32) -> (i32, i32) {
    %c0_i32 = arith.constant 0 : i32
    %c0_i32_0 = arith.constant 0 : i32
    %c0_i32_1 = arith.constant 0 : i32
    return %c0_i32, %c0_i32_0 : i32, i32
  }
  func.func @transform_7(%arg0: i32) -> (i32, i32) {
    %c0_i32 = arith.constant 0 : i32
    %c0_i32_0 = arith.constant 0 : i32
    %c0_i32_1 = arith.constant 0 : i32
    return %c0_i32, %c0_i32_0 : i32, i32
  }
  func.func @transform_8(%arg0: i32) -> (i32, i32) {
    %c0_i32 = arith.constant 0 : i32
    %c0_i32_0 = arith.constant 0 : i32
    %c0_i32_1 = arith.constant 0 : i32
    return %c0_i32, %c0_i32_0 : i32, i32
  }
  func.func @transform_9(%arg0: i32) -> (i32, i32) {
    %c0_i32 = arith.constant 0 : i32
    %c0_i32_0 = arith.constant 0 : i32
    return %arg0, %c0_i32 : i32, i32
  }
}

</mosaic_0001>

<llo_original>
// kernel: tpu_custom_call.1
$region0: #{tpu_custom_call.1}
  #allocation0 [shape = 'u32[]', space=smem, size = 0x4, offset = 0x4, fixed_abs, tag = 'smem constant byte address 0x4 - core index']
  #allocation1 [shape = 'u32[144,128]{1,0:T(1,128)}', space=vmem, size = 0x12000, scoped, tag = 'internal scratch']
  %s0 = inlined_call_operand.vmem [shape: f32[8,8,1], index: 0, kind: input, shape index: {}]
  %s1 = inlined_call_operand.vmem [shape: f32[1,256], index: 1, kind: input, shape index: {}]
  %s2 = inlined_call_operand.vmem [shape: f32[1,256], index: 2, kind: input, shape index: {}]
  %s3 = inlined_call_operand.vmem [shape: bf16[64,256], index: 3, kind: input, shape index: {}]
  %s4 = inlined_call_operand.hbm [shape: bf16[64,256], index: 4, kind: input, shape index: {}]
  %s5 = inlined_call_operand.hbm [shape: bf16[64,256], index: 5, kind: input, shape index: {}]
  %s6 = inlined_call_operand.vmem [shape: f32[1,256], index: 6, kind: input, shape index: {}]
  %s7 = inlined_call_operand.hbm [shape: f32[64,128], index: 7, kind: input, shape index: {}]
  %s8 = inlined_call_operand.vmem [shape: f32[1,128], index: 8, kind: input, shape index: {}]
  %s9 = inlined_call_operand.hbm [shape: f32[8,128], index: 9, kind: output, shape index: {}]
  %s10 = sld [smem:[#allocation0]]
  $region58: #{tpu_custom_call.1} parent=0
    _
  %s12 = ssub.s32 1, %s10
  %s13 = scalar_select 0, %s12, %s10
  $region1: #{tpu_custom_call.1} parent=0
    #allocation2 [shape = 'u8[32768]{0}', space=vmem, size = 0x8000, scoped, tag = 'input window, operand 4, single buffered']
    #allocation3 [shape = 's32[1]{0}', space=sflag, size = 0x4, scoped, tag = 'scoped memory for tpu_custom_call.1']
    #allocation4 [shape = 's32[1]{0}', space=sflag, size = 0x4, scoped, tag = 'scoped memory for tpu_custom_call.1']
    #allocation5 [shape = 'u8[32768]{0}', space=vmem, size = 0x8000, scoped, tag = 'input window, operand 5, single buffered']
    #allocation6 [shape = 's32[1]{0}', space=sflag, size = 0x4, scoped, tag = 'scoped memory for tpu_custom_call.1']
    #allocation7 [shape = 'u8[32768]{0}', space=vmem, size = 0x8000, scoped, tag = 'input window, operand 7, single buffered']
    #allocation8 [shape = 'u8[4096]{0}', space=vmem, size = 0x1000, scoped, tag = 'output window, operand 0, single buffered']
    %14 = vsyncpa [#allocation3], 0
    %15 = vsyncpa [#allocation6], 0
    %16 = vsyncpa [#allocation4], 0
    // Predicated region
    $region2: #{tpu_custom_call.1} parent=1 // pred_check
      _
    $region3: #{tpu_custom_call.1} parent=1 // pred_check_branch
      %18 = sbr.rel (0) target = $region5
    $region4: #{tpu_custom_call.1} parent=1 // pred_region
      _
    $region5: #{tpu_custom_call.1} parent=1 // pred_fallthru
      _
    // Predicated region
    $region6: #{tpu_custom_call.1} parent=1 // pred_check
      _
    $region7: #{tpu_custom_call.1} parent=1 // pred_check_branch
      %20 = sbr.rel (0) target = $region9
    $region8: #{tpu_custom_call.1} parent=1 // pred_region
      _
    $region9: #{tpu_custom_call.1} parent=1 // pred_fallthru
      _
    // Predicated region
    $region10: #{tpu_custom_call.1} parent=1 // pred_check
      _
    $region11: #{tpu_custom_call.1} parent=1 // pred_check_branch
      %22 = sbr.rel (0) target = $region13
    $region12: #{tpu_custom_call.1} parent=1 // pred_region
      _
    $region13: #{tpu_custom_call.1} parent=1 // pred_fallthru
      _
    // Predicated region
    $region14: #{tpu_custom_call.1} parent=1 // pred_check
      _
    $region15: #{tpu_custom_call.1} parent=1 // pred_check_branch
      %24 = sbr.rel (0) target = $region17
    $region16: #{tpu_custom_call.1} parent=1 // pred_region
      _
    $region17: #{tpu_custom_call.1} parent=1 // pred_fallthru
      _
    // Predicated region
    $region18: #{tpu_custom_call.1} parent=1 // pred_check
      _
    $region19: #{tpu_custom_call.1} parent=1 // pred_check_branch
      %26 = sbr.rel (0) target = $region21
    $region20: #{tpu_custom_call.1} parent=1 // pred_region
      %s28 = ssub.s32 1024, 1024
      %29 = vsyncadd [#allocation3], %s28
      %s30 = sshll.u32 [#allocation2], 4
      %s31 = int_to_ptr.vmem [resolvable:$true] %s30
      %36 = dma.hbm_to_vmem [thread:$0]  %s4, 1024, %s31, [#allocation3], 128, 128, 8
    $region21: #{tpu_custom_call.1} parent=1 // pred_fallthru
      _
    // Predicated region
    $region22: #{tpu_custom_call.1} parent=1 // pred_check
      _
    $region23: #{tpu_custom_call.1} parent=1 // pred_check_branch
      %38 = sbr.rel (0) target = $region25
    $region24: #{tpu_custom_call.1} parent=1 // pred_region
      %s40 = ssub.s32 1024, 1024
      %41 = vsyncadd [#allocation6], %s40
      %s42 = sshll.u32 [#allocation5], 4
      %s43 = int_to_ptr.vmem [resolvable:$true] %s42
      %48 = dma.hbm_to_vmem [thread:$0]  %s5, 1024, %s43, [#allocation6], 128, 128, 8
    $region25: #{tpu_custom_call.1} parent=1 // pred_fallthru
      _
    // Predicated region
    $region26: #{tpu_custom_call.1} parent=1 // pred_check
      _
    $region27: #{tpu_custom_call.1} parent=1 // pred_check_branch
      %50 = sbr.rel (0) target = $region29
    $region28: #{tpu_custom_call.1} parent=1 // pred_region
      _
    $region29: #{tpu_custom_call.1} parent=1 // pred_fallthru
      _
    // Predicated region
    $region30: #{tpu_custom_call.1} parent=1 // pred_check
      _
    $region31: #{tpu_custom_call.1} parent=1 // pred_check_branch
      %52 = sbr.rel (0) target = $region33
    $region32: #{tpu_custom_call.1} parent=1 // pred_region
      %s54 = ssub.s32 1024, 1024
      %55 = vsyncadd [#allocation6], %s54
      %s56 = sshll.u32 [#allocation7], 4
      %s57 = int_to_ptr.vmem [resolvable:$true] %s56
      %62 = dma.hbm_to_vmem [thread:$0]  %s7, 1024, %s57, [#allocation6], 128, 128, 8
    $region33: #{tpu_custom_call.1} parent=1 // pred_fallthru
      _
    // Predicated region
    $region34: #{tpu_custom_call.1} parent=1 // pred_check
      _
    $region35: #{tpu_custom_call.1} parent=1 // pred_check_branch
      %64 = sbr.rel (0) target = $region37
    $region36: #{tpu_custom_call.1} parent=1 // pred_region
      _
    $region37: #{tpu_custom_call.1} parent=1 // pred_fallthru
      _
    // Predicated region
    $region38: #{tpu_custom_call.1} parent=1 // pred_check
      _
    $region39: #{tpu_custom_call.1} parent=1 // pred_check_branch
      %66 = sbr.rel (0) target = $region41
    $region40: #{tpu_custom_call.1} parent=1 // pred_region
      %67 = dma.done [#allocation3], 1024
    $region41: #{tpu_custom_call.1} parent=1 // pred_fallthru
      _
    // Predicated region
    $region42: #{tpu_custom_call.1} parent=1 // pred_check
      _
    $region43: #{tpu_custom_call.1} parent=1 // pred_check_branch
      %69 = sbr.rel (0) target = $region45
    $region44: #{tpu_custom_call.1} parent=1 // pred_region
      %70 = dma.done [#allocation6], 1024
    $region45: #{tpu_custom_call.1} parent=1 // pred_fallthru
      _
    // Predicated region
    $region46: #{tpu_custom_call.1} parent=1 // pred_check
      _
    $region47: #{tpu_custom_call.1} parent=1 // pred_check_branch
      %72 = sbr.rel (0) target = $region49
    $region48: #{tpu_custom_call.1} parent=1 // pred_region
      %73 = dma.done [#allocation6], 1024
    $region49: #{tpu_custom_call.1} parent=1 // pred_fallthru
      _
    %v75 = vld [vmem:[%s1] sm:$0x3]
    %v77 = vlaneseq
    %v78 = vshrl.u32 %v77, 7
    %v79 = vsub.s32 0, %v78
    %v80 = vrot.slane %v75, %v79
    %v81 = vlaneseq
    %v82 = vshrl.u32 %v81, 7
    %v83 = vsub.s32 1, %v82
    %v84 = vrot.slane %v75, %v83
    %v87 = vld [vmem:[%s2] sm:$0x3]
    %v89 = vlaneseq
    %v90 = vshrl.u32 %v89, 7
    %v91 = vsub.s32 0, %v90
    %v92 = vrot.slane %v87, %v91
    %v93 = vlaneseq
    %v94 = vshrl.u32 %v93, 7
    %v95 = vsub.s32 1, %v94
    %v96 = vrot.slane %v87, %v95
    %v99 = vld [vmem:[%s6] sm:$0x3]
    %v101 = vlaneseq
    %v102 = vshrl.u32 %v101, 7
    %v103 = vsub.s32 0, %v102
    %v104 = vrot.slane %v99, %v103
    %v105 = vlaneseq
    %v106 = vshrl.u32 %v105, 7
    %v107 = vsub.s32 1, %v106
    %v108 = vrot.slane %v99, %v107
    %v111 = vld [vmem:[#allocation5] sm:$0xff]
    %v112 = vld [vmem:[#allocation5 + $0x8] sm:$0xff]
    %v113 = vld [vmem:[#allocation5 + $0x10] sm:$0xff]
    %v114 = vld [vmem:[#allocation5 + $0x18] sm:$0xff]
    %v115 = vld [vmem:[#allocation5 + $0x20] sm:$0xff]
    %v116 = vld [vmem:[#allocation5 + $0x28] sm:$0xff]
    %v117 = vld [vmem:[#allocation5 + $0x30] sm:$0xff]
    %v118 = vld [vmem:[#allocation5 + $0x38] sm:$0xff]
    %v119 = vld [vmem:[%s0] sm:$0xff]
    %121 = vset.pattern.permute.xlu0 0
    %122 = vperm.xlu0 %121, %v119
    %v123 = vpop.permute.xlu0 %122
    %v125 = vmul.f32 %v123, %v80
    %v126 = vmul.f32 %v123, %v84
    %v127 = vadd.f32 %v92, %v125
    %v128 = vadd.f32 %v96, %v126
    %v129 = vld [vmem:[%s3] sm:$0xff]
    %v130 = vld [vmem:[%s3 + $0x8] sm:$0xff]
    %v131 = vld [vmem:[%s3 + $0x10] sm:$0xff]
    %v132 = vld [vmem:[%s3 + $0x18] sm:$0xff]
    %v133 = vld [vmem:[%s3 + $0x20] sm:$0xff]
    %v134 = vld [vmem:[%s3 + $0x28] sm:$0xff]
    %v135 = vld [vmem:[%s3 + $0x30] sm:$0xff]
    %v136 = vld [vmem:[%s3 + $0x38] sm:$0xff]
    %v145 = vunpack.c.l.b16 %v129
    %v146 = vunpack.c.h.b16 %v129
    %v147 = vunpack.c.l.b16 %v130
    %v148 = vunpack.c.h.b16 %v130
    %v149 = vunpack.c.l.b16 %v131
    %v150 = vunpack.c.h.b16 %v131
    %v151 = vunpack.c.l.b16 %v132
    %v152 = vunpack.c.h.b16 %v132
    %v153 = vunpack.c.l.b16 %v133
    %v154 = vunpack.c.h.b16 %v133
    %v155 = vunpack.c.l.b16 %v134
    %v156 = vunpack.c.h.b16 %v134
    %v157 = vunpack.c.l.b16 %v135
    %v158 = vunpack.c.h.b16 %v135
    %v159 = vunpack.c.l.b16 %v136
    %v160 = vunpack.c.h.b16 %v136
    %v161 = vpack.c.b16 %v147, %v145
    %v162 = vpack.c.b16 %v148, %v146
    %v163 = vpack.c.b16 %v151, %v149
    %v164 = vpack.c.b16 %v152, %v150
    %v165 = vpack.c.b16 %v155, %v153
    %v166 = vpack.c.b16 %v156, %v154
    %v167 = vpack.c.b16 %v159, %v157
    %v168 = vpack.c.b16 %v160, %v158
    %vm177 = vcmask 523264
    %v179 = vsel %vm177, 0, 0
    %181 = vmatprep.subr.bf16.mxu0 %v162
    %182 = vmatpush1.bf16.msra.mxu0 %v161
    %183 = vmatprep.subr.bf16.mxu0 %v164
    %184 = vmatpush1.bf16.msra.mxu0 %v163
    %185 = vmatprep.subr.bf16.mxu0 %v166
    %186 = vmatpush1.bf16.msra.mxu0 %v165
    %187 = vmatprep.subr.bf16.mxu0 %v168
    %188 = vmatpush1.bf16.msra.mxu0 %v167
    %189 = vmatprep.subr.bf16.mxu0 0
    %190 = vmatpush1.bf16.msra.mxu0 0
    %191 = vmatprep.subr.bf16.mxu0 0
    %192 = vmatpush1.bf16.msra.mxu0 0
    %193 = vmatprep.subr.bf16.mxu0 0
    %194 = vmatpush1.bf16.msra.mxu0 0
    %195 = vmatprep.subr.bf16.mxu0 0
    %196 = vmatpush1.bf16.msra.mxu0 0
    %197 = vmatprep.subr.bf16.mxu0 0
    %198 = vmatpush1.bf16.msra.mxu0 0
    %199 = vmatprep.subr.bf16.mxu0 0
    %200 = vmatpush1.bf16.msra.mxu0 0
    %201 = vmatprep.subr.bf16.mxu0 0
    %202 = vmatpush1.bf16.msra.mxu0 0
    %203 = vmatprep.subr.bf16.mxu0 0
    %204 = vmatpush1.bf16.msra.mxu0 0
    %205 = vmatprep.subr.bf16.mxu0 0
    %206 = vmatpush1.bf16.msra.mxu0 0
    %207 = vmatprep.subr.bf16.mxu0 0
    %208 = vmatpush1.bf16.msra.mxu0 0
    %209 = vmatprep.subr.bf16.mxu0 0
    %210 = vmatpush1.bf16.msra.mxu0 0
    %211 = vmatprep.subr.bf16.mxu0 0
    %212 = vmatpush1.bf16.msra.mxu0 0
    %213 = vmatprep.mubr.bf16.mxu0 0
    %214 = vmatmul.mubr.bf16.gmra.mrb[0].mxu0 %v179
    %v215 = vpop.f32.mrb[0].mxu0
    %v216 = vadd.f32 0.0, %v215
    %v217 = vpop.f32.mrb[0].mxu0
    %v218 = vadd.f32 0.0, %v217
    %v219 = vpop.f32.mrb[0].mxu0
    %v220 = vpop.f32.mrb[0].mxu0
    %221 = vdwg.mxu0
    %v222 = vadd.f32 %v127, %v216
    %v223 = vadd.f32 %v128, %v218
    %v224 = vxor.u32 %v222, 2147483648
    %v225 = vxor.u32 %v223, 2147483648
    %v226 = vmul.f32 %v224, 1.442695
    %v227 = vpow.pop %v226
    %v228 = vmul.f32 %v225, 1.442695
    %v229 = vpow.pop %v228
    %v230 = vadd.f32 %v227, 1.0
    %v231 = vadd.f32 %v229, 1.0
    %v232 = vrcp.pop %v230
    %v233 = vmul.f32 1.0, %v232
    %v234 = vrcp.pop %v231
    %v235 = vmul.f32 1.0, %v234
    %v236 = vtanh.pop %v223
    %v237 = vmul.f32 %v233, 0.0
    %239 = vrot.lane.b32.xlu0 %v236, 64
    %v240 = vpop.permute.xlu0 %239
    %v242 = vmul.f32 %v233, %v240
    %244 = vrot.lane.b32.xlu0 %v242, 64
    %v245 = vpop.permute.xlu0 %244
    %v247 = vadd.f32 %v237, %v245
    %v248 = vtanh.pop %v247
    %250 = vrot.lane.b32.xlu0 %v248, 64
    %v251 = vpop.permute.xlu0 %250
    %v253 = vmul.f32 %v235, %v251
    %v262 = vunpack.c.l.b16 %v111
    %v263 = vunpack.c.h.b16 %v111
    %v264 = vunpack.c.l.b16 %v112
    %v265 = vunpack.c.h.b16 %v112
    %v266 = vunpack.c.l.b16 %v113
    %v267 = vunpack.c.h.b16 %v113
    %v268 = vunpack.c.l.b16 %v114
    %v269 = vunpack.c.h.b16 %v114
    %v270 = vunpack.c.l.b16 %v115
    %v271 = vunpack.c.h.b16 %v115
    %v272 = vunpack.c.l.b16 %v116
    %v273 = vunpack.c.h.b16 %v116
    %v274 = vunpack.c.l.b16 %v117
    %v275 = vunpack.c.h.b16 %v117
    %v276 = vunpack.c.l.b16 %v118
    %v277 = vunpack.c.h.b16 %v118
    %v278 = vpack.c.b16 %v264, %v262
    %v279 = vpack.c.b16 %v265, %v263
    %v280 = vpack.c.b16 %v268, %v266
    %v281 = vpack.c.b16 %v269, %v267
    %v282 = vpack.c.b16 %v272, %v270
    %v283 = vpack.c.b16 %v273, %v271
    %v284 = vpack.c.b16 %v276, %v274
    %v285 = vpack.c.b16 %v277, %v275
    %294 = vmatprep.subr.bf16.mxu0 %v279
    %295 = vmatpush1.bf16.msra.mxu0 %v278
    %296 = vmatprep.subr.bf16.mxu0 %v281
    %297 = vmatpush1.bf16.msra.mxu0 %v280
    %298 = vmatprep.subr.bf16.mxu0 %v283
    %299 = vmatpush1.bf16.msra.mxu0 %v282
    %300 = vmatprep.subr.bf16.mxu0 %v285
    %301 = vmatpush1.bf16.msra.mxu0 %v284
    %302 = vmatprep.subr.bf16.mxu0 0
    %303 = vmatpush1.bf16.msra.mxu0 0
    %304 = vmatprep.subr.bf16.mxu0 0
    %305 = vmatpush1.bf16.msra.mxu0 0
    %306 = vmatprep.subr.bf16.mxu0 0
    %307 = vmatpush1.bf16.msra.mxu0 0
    %308 = vmatprep.subr.bf16.mxu0 0
    %309 = vmatpush1.bf16.msra.mxu0 0
    %310 = vmatprep.subr.bf16.mxu0 0
    %311 = vmatpush1.bf16.msra.mxu0 0
    %312 = vmatprep.subr.bf16.mxu0 0
    %313 = vmatpush1.bf16.msra.mxu0 0
    %314 = vmatprep.subr.bf16.mxu0 0
    %315 = vmatpush1.bf16.msra.mxu0 0
    %316 = vmatprep.subr.bf16.mxu0 0
    %317 = vmatpush1.bf16.msra.mxu0 0
    %318 = vmatprep.subr.bf16.mxu0 0
    %319 = vmatpush1.bf16.msra.mxu0 0
    %320 = vmatprep.subr.bf16.mxu0 0
    %321 = vmatpush1.bf16.msra.mxu0 0
    %322 = vmatprep.subr.bf16.mxu0 0
    %323 = vmatpush1.bf16.msra.mxu0 0
    %324 = vmatprep.subr.bf16.mxu0 0
    %325 = vmatpush1.bf16.msra.mxu0 0
    %326 = vmatprep.mubr.bf16.mxu0 0
    %327 = vmatmul.mubr.bf16.gmra.mrb[0].mxu0 %v179
    %v328 = vpop.f32.mrb[0].mxu0
    %v329 = vadd.f32 %v104, %v328
    %v330 = vpop.f32.mrb[0].mxu0
    %v331 = vadd.f32 %v108, %v330
    %v332 = vpop.f32.mrb[0].mxu0
    %v333 = vpop.f32.mrb[0].mxu0
    %334 = vdwg.mxu0
    %v335 = vpack.c.bf16 %v253, %v253
    %v336 = vld [vmem:[#allocation2] sm:$0xff]
    %v337 = vld [vmem:[#allocation2 + $0x8] sm:$0xff]
    %v338 = vld [vmem:[#allocation2 + $0x10] sm:$0xff]
    %v339 = vld [vmem:[#allocation2 + $0x18] sm:$0xff]
    %v340 = vld [vmem:[#allocation2 + $0x20] sm:$0xff]
    %v341 = vld [vmem:[#allocation2 + $0x28] sm:$0xff]
    %v342 = vld [vmem:[#allocation2 + $0x30] sm:$0xff]
    %v343 = vld [vmem:[#allocation2 + $0x38] sm:$0xff]
    %v352 = vunpack.c.l.b16 %v336
    %v353 = vunpack.c.h.b16 %v336
    %v354 = vunpack.c.l.b16 %v337
    %v355 = vunpack.c.h.b16 %v337
    %v356 = vunpack.c.l.b16 %v338
    %v357 = vunpack.c.h.b16 %v338
    %v358 = vunpack.c.l.b16 %v339
    %v359 = vunpack.c.h.b16 %v339
    %v360 = vunpack.c.l.b16 %v340
    %v361 = vunpack.c.h.b16 %v340
    %v362 = vunpack.c.l.b16 %v341
    %v363 = vunpack.c.h.b16 %v341
    %v364 = vunpack.c.l.b16 %v342
    %v365 = vunpack.c.h.b16 %v342
    %v366 = vunpack.c.l.b16 %v343
    %v367 = vunpack.c.h.b16 %v343
    %v368 = vpack.c.b16 %v354, %v352
    %v369 = vpack.c.b16 %v355, %v353
    %v370 = vpack.c.b16 %v358, %v356
    %v371 = vpack.c.b16 %v359, %v357
    %v372 = vpack.c.b16 %v362, %v360
    %v373 = vpack.c.b16 %v363, %v361
    %v374 = vpack.c.b16 %v366, %v364
    %v375 = vpack.c.b16 %v367, %v365
    %v385 = vsel %vm177, %v335, 0
    %387 = vmatprep.subr.bf16.mxu0 %v369
    %388 = vmatpush1.bf16.msra.mxu0 %v368
    %389 = vmatprep.subr.bf16.mxu0 %v371
    %390 = vmatpush1.bf16.msra.mxu0 %v370
    %391 = vmatprep.subr.bf16.mxu0 %v373
    %392 = vmatpush1.bf16.msra.mxu0 %v372
    %393 = vmatprep.subr.bf16.mxu0 %v375
    %394 = vmatpush1.bf16.msra.mxu0 %v374
    %395 = vmatprep.subr.bf16.mxu0 0
    %396 = vmatpush1.bf16.msra.mxu0 0
    %397 = vmatprep.subr.bf16.mxu0 0
    %398 = vmatpush1.bf16.msra.mxu0 0
    %399 = vmatprep.subr.bf16.mxu0 0
    %400 = vmatpush1.bf16.msra.mxu0 0
    %401 = vmatprep.subr.bf16.mxu0 0
    %402 = vmatpush1.bf16.msra.mxu0 0
    %403 = vmatprep.subr.bf16.mxu0 0
    %404 = vmatpush1.bf16.msra.mxu0 0
    %405 = vmatprep.subr.bf16.mxu0 0
    %406 = vmatpush1.bf16.msra.mxu0 0
    %407 = vmatprep.subr.bf16.mxu0 0
    %408 = vmatpush1.bf16.msra.mxu0 0
    %409 = vmatprep.subr.bf16.mxu0 0
    %410 = vmatpush1.bf16.msra.mxu0 0
    %411 = vmatprep.subr.bf16.mxu0 0
    %412 = vmatpush1.bf16.msra.mxu0 0
    %413 = vmatprep.subr.bf16.mxu0 0
    %414 = vmatpush1.bf16.msra.mxu0 0
    %415 = vmatprep.subr.bf16.mxu0 0
    %416 = vmatpush1.bf16.msra.mxu0 0
    %417 = vmatprep.subr.bf16.mxu0 0
    %418 = vmatpush1.bf16.msra.mxu0 0
    %419 = vmatprep.mubr.bf16.mxu0 0
    %420 = vmatmul.mubr.bf16.gmra.mrb[0].mxu0 %v385
    %v421 = vpop.f32.mrb[0].mxu0
    %v422 = vadd.f32 0.0, %v421
    %v423 = vpop.f32.mrb[0].mxu0
    %v424 = vadd.f32 0.0, %v423
    %v425 = vpop.f32.mrb[0].mxu0
    %v426 = vpop.f32.mrb[0].mxu0
    %427 = vdwg.mxu0
    %v428 = vadd.f32 %v329, %v422
    %v429 = vadd.f32 %v331, %v424
    %v430 = vxor.u32 %v428, 2147483648
    %v431 = vxor.u32 %v429, 2147483648
    %v432 = vmul.f32 %v430, 1.442695
    %v433 = vpow.pop %v432
    %v434 = vmul.f32 %v431, 1.442695
    %v435 = vpow.pop %v434
    %v436 = vadd.f32 %v433, 1.0
    %v437 = vadd.f32 %v435, 1.0
    %v438 = vrcp.pop %v436
    %v439 = vmul.f32 1.0, %v438
    %v440 = vrcp.pop %v437
    %v441 = vmul.f32 1.0, %v440
    %v442 = vtanh.pop %v429
    %v443 = vmul.f32 %v439, 0.0
    %445 = vrot.lane.b32.xlu0 %v442, 64
    %v446 = vpop.permute.xlu0 %445
    %v448 = vmul.f32 %v439, %v446
    %450 = vrot.lane.b32.xlu0 %v448, 64
    %v451 = vpop.permute.xlu0 %450
    %v453 = vadd.f32 %v443, %v451
    %v454 = vtanh.pop %v453
    %456 = vrot.lane.b32.xlu0 %v454, 64
    %v457 = vpop.permute.xlu0 %456
    %v459 = vmul.f32 %v441, %v457
    %v460 = vpack.c.bf16 %v459, %v459
    %s461 = scalar_lea.vmem %s0, 8
    %v462 = vld [vmem:[%s461] sm:$0xff]
    %464 = vset.pattern.permute.xlu0 0
    %465 = vperm.xlu0 %464, %v462
    %v466 = vpop.permute.xlu0 %465
    %v468 = vmul.f32 %v466, %v80
    %v469 = vmul.f32 %v466, %v84
    %v470 = vadd.f32 %v92, %v468
    %v471 = vadd.f32 %v96, %v469
    %472 = vmatprep.subr.bf16.mxu0 %v162
    %473 = vmatpush1.bf16.msra.mxu0 %v161
    %474 = vmatprep.subr.bf16.mxu0 %v164
    %475 = vmatpush1.bf16.msra.mxu0 %v163
    %476 = vmatprep.subr.bf16.mxu0 %v166
    %477 = vmatpush1.bf16.msra.mxu0 %v165
    %478 = vmatprep.subr.bf16.mxu0 %v168
    %479 = vmatpush1.bf16.msra.mxu0 %v167
    %480 = vmatprep.subr.bf16.mxu0 0
    %481 = vmatpush1.bf16.msra.mxu0 0
    %482 = vmatprep.subr.bf16.mxu0 0
    %483 = vmatpush1.bf16.msra.mxu0 0
    %484 = vmatprep.subr.bf16.mxu0 0
    %485 = vmatpush1.bf16.msra.mxu0 0
    %486 = vmatprep.subr.bf16.mxu0 0
    %487 = vmatpush1.bf16.msra.mxu0 0
    %488 = vmatprep.subr.bf16.mxu0 0
    %489 = vmatpush1.bf16.msra.mxu0 0
    %490 = vmatprep.subr.bf16.mxu0 0
    %491 = vmatpush1.bf16.msra.mxu0 0
    %492 = vmatprep.subr.bf16.mxu0 0
    %493 = vmatpush1.bf16.msra.mxu0 0
    %494 = vmatprep.subr.bf16.mxu0 0
    %495 = vmatpush1.bf16.msra.mxu0 0
    %496 = vmatprep.subr.bf16.mxu0 0
    %497 = vmatpush1.bf16.msra.mxu0 0
    %498 = vmatprep.subr.bf16.mxu0 0
    %499 = vmatpush1.bf16.msra.mxu0 0
    %500 = vmatprep.subr.bf16.mxu0 0
    %501 = vmatpush1.bf16.msra.mxu0 0
    %502 = vmatprep.subr.bf16.mxu0 0
    %503 = vmatpush1.bf16.msra.mxu0 0
    %504 = vmatprep.mubr.bf16.mxu0 0
    %505 = vmatmul.mubr.bf16.gmra.mrb[0].mxu0 %v385
    %v506 = vpop.f32.mrb[0].mxu0
    %v507 = vadd.f32 0.0, %v506
    %v508 = vpop.f32.mrb[0].mxu0
    %v509 = vadd.f32 0.0, %v508
    %v510 = vpop.f32.mrb[0].mxu0
    %v511 = vpop.f32.mrb[0].mxu0
    %512 = vdwg.mxu0
    %v513 = vadd.f32 %v470, %v507
    %v514 = vadd.f32 %v471, %v509
    %v515 = vxor.u32 %v513, 2147483648
    %v516 = vxor.u32 %v514, 2147483648
    %v517 = vmul.f32 %v515, 1.442695
    %v518 = vpow.pop %v517
    %v519 = vmul.f32 %v516, 1.442695
    %v520 = vpow.pop %v519
    %v521 = vadd.f32 %v518, 1.0
    %v522 = vadd.f32 %v520, 1.0
    %v523 = vrcp.pop %v521
    %v524 = vmul.f32 1.0, %v523
    %v525 = vrcp.pop %v522
    %v526 = vmul.f32 1.0, %v525
    %v527 = vtanh.pop %v514
    %v528 = vmul.f32 %v524, %v247
    %530 = vrot.lane.b32.xlu0 %v527, 64
    %v531 = vpop.permute.xlu0 %530
    %v533 = vmul.f32 %v524, %v531
    %535 = vrot.lane.b32.xlu0 %v533, 64
    %v536 = vpop.permute.xlu0 %535
    %v538 = vadd.f32 %v528, %v536
    %v539 = vtanh.pop %v538
    %541 = vrot.lane.b32.xlu0 %v539, 64
    %v542 = vpop.permute.xlu0 %541
    %v544 = vmul.f32 %v526, %v542
    %v546 = vsel %vm177, %v460, 0
    %548 = vmatprep.subr.bf16.mxu0 %v279
    %549 = vmatpush1.bf16.msra.mxu0 %v278
    %550 = vmatprep.subr.bf16.mxu0 %v281
    %551 = vmatpush1.bf16.msra.mxu0 %v280
    %552 = vmatprep.subr.bf16.mxu0 %v283
    %553 = vmatpush1.bf16.msra.mxu0 %v282
    %554 = vmatprep.subr.bf16.mxu0 %v285
    %555 = vmatpush1.bf16.msra.mxu0 %v284
    %556 = vmatprep.subr.bf16.mxu0 0
    %557 = vmatpush1.bf16.msra.mxu0 0
    %558 = vmatprep.subr.bf16.mxu0 0
    %559 = vmatpush1.bf16.msra.mxu0 0
    %560 = vmatprep.subr.bf16.mxu0 0
    %561 = vmatpush1.bf16.msra.mxu0 0
    %562 = vmatprep.subr.bf16.mxu0 0
    %563 = vmatpush1.bf16.msra.mxu0 0
    %564 = vmatprep.subr.bf16.mxu0 0
    %565 = vmatpush1.bf16.msra.mxu0 0
    %566 = vmatprep.subr.bf16.mxu0 0
    %567 = vmatpush1.bf16.msra.mxu0 0
    %568 = vmatprep.subr.bf16.mxu0 0
    %569 = vmatpush1.bf16.msra.mxu0 0
    %570 = vmatprep.subr.bf16.mxu0 0
    %571 = vmatpush1.bf16.msra.mxu0 0
    %572 = vmatprep.subr.bf16.mxu0 0
    %573 = vmatpush1.bf16.msra.mxu0 0
    %574 = vmatprep.subr.bf16.mxu0 0
    %575 = vmatpush1.bf16.msra.mxu0 0
    %576 = vmatprep.subr.bf16.mxu0 0
    %577 = vmatpush1.bf16.msra.mxu0 0
    %578 = vmatprep.subr.bf16.mxu0 0
    %579 = vmatpush1.bf16.msra.mxu0 0
    %580 = vmatprep.mubr.bf16.mxu0 0
    %581 = vmatmul.mubr.bf16.gmra.mrb[0].mxu0 %v546
    %v582 = vpop.f32.mrb[0].mxu0
    %v583 = vadd.f32 %v104, %v582
    %v584 = vpop.f32.mrb[0].mxu0
    %v585 = vadd.f32 %v108, %v584
    %v586 = vpop.f32.mrb[0].mxu0
    %v587 = vpop.f32.mrb[0].mxu0
    %588 = vdwg.mxu0
    %v589 = vpack.c.bf16 %v544, %v544
    %v591 = vsel %vm177, %v589, 0
    %593 = vmatprep.subr.bf16.mxu0 %v369
    %594 = vmatpush1.bf16.msra.mxu0 %v368
    %595 = vmatprep.subr.bf16.mxu0 %v371
    %596 = vmatpush1.bf16.msra.mxu0 %v370
    %597 = vmatprep.subr.bf16.mxu0 %v373
    %598 = vmatpush1.bf16.msra.mxu0 %v372
    %599 = vmatprep.subr.bf16.mxu0 %v375
    %600 = vmatpush1.bf16.msra.mxu0 %v374
    %601 = vmatprep.subr.bf16.mxu0 0
    %602 = vmatpush1.bf16.msra.mxu0 0
    %603 = vmatprep.subr.bf16.mxu0 0
    %604 = vmatpush1.bf16.msra.mxu0 0
    %605 = vmatprep.subr.bf16.mxu0 0
    %606 = vmatpush1.bf16.msra.mxu0 0
    %607 = vmatprep.subr.bf16.mxu0 0
    %608 = vmatpush1.bf16.msra.mxu0 0
    %609 = vmatprep.subr.bf16.mxu0 0
    %610 = vmatpush1.bf16.msra.mxu0 0
    %611 = vmatprep.subr.bf16.mxu0 0
    %612 = vmatpush1.bf16.msra.mxu0 0
    %613 = vmatprep.subr.bf16.mxu0 0
    %614 = vmatpush1.bf16.msra.mxu0 0
    %615 = vmatprep.subr.bf16.mxu0 0
    %616 = vmatpush1.bf16.msra.mxu0 0
    %617 = vmatprep.subr.bf16.mxu0 0
    %618 = vmatpush1.bf16.msra.mxu0 0
    %619 = vmatprep.subr.bf16.mxu0 0
    %620 = vmatpush1.bf16.msra.mxu0 0
    %621 = vmatprep.subr.bf16.mxu0 0
    %622 = vmatpush1.bf16.msra.mxu0 0
    %623 = vmatprep.subr.bf16.mxu0 0
    %624 = vmatpush1.bf16.msra.mxu0 0
    %625 = vmatprep.mubr.bf16.mxu0 0
    %626 = vmatmul.mubr.bf16.gmra.mrb[0].mxu0 %v591
    %v627 = vpop.f32.mrb[0].mxu0
    %v628 = vadd.f32 0.0, %v627
    %v629 = vpop.f32.mrb[0].mxu0
    %v630 = vadd.f32 0.0, %v629
    %v631 = vpop.f32.mrb[0].mxu0
    %v632 = vpop.f32.mrb[0].mxu0
    %633 = vdwg.mxu0
    %v634 = vadd.f32 %v583, %v628
    %v635 = vadd.f32 %v585, %v630
    %v636 = vxor.u32 %v634, 2147483648
    %v637 = vxor.u32 %v635, 2147483648
    %v638 = vmul.f32 %v636, 1.442695
    %v639 = vpow.pop %v638
    %v640 = vmul.f32 %v637, 1.442695
    %v641 = vpow.pop %v640
    %v642 = vadd.f32 %v639, 1.0
    %v643 = vadd.f32 %v641, 1.0
    %v644 = vrcp.pop %v642
    %v645 = vmul.f32 1.0, %v644
    %v646 = vrcp.pop %v643
    %v647 = vmul.f32 1.0, %v646
    %v648 = vtanh.pop %v635
    %v649 = vmul.f32 %v645, %v453
    %651 = vrot.lane.b32.xlu0 %v648, 64
    %v652 = vpop.permute.xlu0 %651
    %v654 = vmul.f32 %v645, %v652
    %656 = vrot.lane.b32.xlu0 %v654, 64
    %v657 = vpop.permute.xlu0 %656
    %v659 = vadd.f32 %v649, %v657
    %v660 = vtanh.pop %v659
    %662 = vrot.lane.b32.xlu0 %v660, 64
    %v663 = vpop.permute.xlu0 %662
    %v665 = vmul.f32 %v647, %v663
    %v666 = vpack.c.bf16 %v665, %v665
    %s667 = scalar_lea.vmem %s0, 16
    %v668 = vld [vmem:[%s667] sm:$0xff]
    %670 = vset.pattern.permute.xlu0 0
    %671 = vperm.xlu0 %670, %v668
    %v672 = vpop.permute.xlu0 %671
    %v674 = vmul.f32 %v672, %v80
    %v675 = vmul.f32 %v672, %v84
    %v676 = vadd.f32 %v92, %v674
    %v677 = vadd.f32 %v96, %v675
    %678 = vmatprep.subr.bf16.mxu0 %v162
    %679 = vmatpush1.bf16.msra.mxu0 %v161
    %680 = vmatprep.subr.bf16.mxu0 %v164
    %681 = vmatpush1.bf16.msra.mxu0 %v163
    %682 = vmatprep.subr.bf16.mxu0 %v166
    %683 = vmatpush1.bf16.msra.mxu0 %v165
    %684 = vmatprep.subr.bf16.mxu0 %v168
    %685 = vmatpush1.bf16.msra.mxu0 %v167
    %686 = vmatprep.subr.bf16.mxu0 0
    %687 = vmatpush1.bf16.msra.mxu0 0
    %688 = vmatprep.subr.bf16.mxu0 0
    %689 = vmatpush1.bf16.msra.mxu0 0
    %690 = vmatprep.subr.bf16.mxu0 0
    %691 = vmatpush1.bf16.msra.mxu0 0
    %692 = vmatprep.subr.bf16.mxu0 0
    %693 = vmatpush1.bf16.msra.mxu0 0
    %694 = vmatprep.subr.bf16.mxu0 0
    %695 = vmatpush1.bf16.msra.mxu0 0
    %696 = vmatprep.subr.bf16.mxu0 0
    %697 = vmatpush1.bf16.msra.mxu0 0
    %698 = vmatprep.subr.bf16.mxu0 0
    %699 = vmatpush1.bf16.msra.mxu0 0
    %700 = vmatprep.subr.bf16.mxu0 0
    %701 = vmatpush1.bf16.msra.mxu0 0
    %702 = vmatprep.subr.bf16.mxu0 0
    %703 = vmatpush1.bf16.msra.mxu0 0
    %704 = vmatprep.subr.bf16.mxu0 0
    %705 = vmatpush1.bf16.msra.mxu0 0
    %706 = vmatprep.subr.bf16.mxu0 0
    %707 = vmatpush1.bf16.msra.mxu0 0
    %708 = vmatprep.subr.bf16.mxu0 0
    %709 = vmatpush1.bf16.msra.mxu0 0
    %710 = vmatprep.mubr.bf16.mxu0 0
    %711 = vmatmul.mubr.bf16.gmra.mrb[0].mxu0 %v591
    %v712 = vpop.f32.mrb[0].mxu0
    %v713 = vadd.f32 0.0, %v712
    %v714 = vpop.f32.mrb[0].mxu0
    %v715 = vadd.f32 0.0, %v714
    %v716 = vpop.f32.mrb[0].mxu0
    %v717 = vpop.f32.mrb[0].mxu0
    %718 = vdwg.mxu0
    %v719 = vadd.f32 %v676, %v713
    %v720 = vadd.f32 %v677, %v715
    %v721 = vxor.u32 %v719, 2147483648
    %v722 = vxor.u32 %v720, 2147483648
    %v723 = vmul.f32 %v721, 1.442695
    %v724 = vpow.pop %v723
    %v725 = vmul.f32 %v722, 1.442695
    %v726 = vpow.pop %v725
    %v727 = vadd.f32 %v724, 1.0
    %v728 = vadd.f32 %v726, 1.0
    %v729 = vrcp.pop %v727
    %v730 = vmul.f32 1.0, %v729
    %v731 = vrcp.pop %v728
    %v732 = vmul.f32 1.0, %v731
    %v733 = vtanh.pop %v720
    %v734 = vmul.f32 %v730, %v538
    %736 = vrot.lane.b32.xlu0 %v733, 64
    %v737 = vpop.permute.xlu0 %736
    %v739 = vmul.f32 %v730, %v737
    %741 = vrot.lane.b32.xlu0 %v739, 64
    %v742 = vpop.permute.xlu0 %741
    %v744 = vadd.f32 %v734, %v742
    %v745 = vtanh.pop %v744
    %747 = vrot.lane.b32.xlu0 %v745, 64
    %v748 = vpop.permute.xlu0 %747
    %v750 = vmul.f32 %v732, %v748
    %v752 = vsel %vm177, %v666, 0
    %754 = vmatprep.subr.bf16.mxu0 %v279
    %755 = vmatpush1.bf16.msra.mxu0 %v278
    %756 = vmatprep.subr.bf16.mxu0 %v281
    %757 = vmatpush1.bf16.msra.mxu0 %v280
    %758 = vmatprep.subr.bf16.mxu0 %v283
    %759 = vmatpush1.bf16.msra.mxu0 %v282
    %760 = vmatprep.subr.bf16.mxu0 %v285
    %761 = vmatpush1.bf16.msra.mxu0 %v284
    %762 = vmatprep.subr.bf16.mxu0 0
    %763 = vmatpush1.bf16.msra.mxu0 0
    %764 = vmatprep.subr.bf16.mxu0 0
    %765 = vmatpush1.bf16.msra.mxu0 0
    %766 = vmatprep.subr.bf16.mxu0 0
    %767 = vmatpush1.bf16.msra.mxu0 0
    %768 = vmatprep.subr.bf16.mxu0 0
    %769 = vmatpush1.bf16.msra.mxu0 0
    %770 = vmatprep.subr.bf16.mxu0 0
    %771 = vmatpush1.bf16.msra.mxu0 0
    %772 = vmatprep.subr.bf16.mxu0 0
    %773 = vmatpush1.bf16.msra.mxu0 0
    %774 = vmatprep.subr.bf16.mxu0 0
    %775 = vmatpush1.bf16.msra.mxu0 0
    %776 = vmatprep.subr.bf16.mxu0 0
    %777 = vmatpush1.bf16.msra.mxu0 0
    %778 = vmatprep.subr.bf16.mxu0 0
    %779 = vmatpush1.bf16.msra.mxu0 0
    %780 = vmatprep.subr.bf16.mxu0 0
    %781 = vmatpush1.bf16.msra.mxu0 0
    %782 = vmatprep.subr.bf16.mxu0 0
    %783 = vmatpush1.bf16.msra.mxu0 0
    %784 = vmatprep.subr.bf16.mxu0 0
    %785 = vmatpush1.bf16.msra.mxu0 0
    %786 = vmatprep.mubr.bf16.mxu0 0
    %787 = vmatmul.mubr.bf16.gmra.mrb[0].mxu0 %v752
    %v788 = vpop.f32.mrb[0].mxu0
    %v789 = vadd.f32 %v104, %v788
    %v790 = vpop.f32.mrb[0].mxu0
    %v791 = vadd.f32 %v108, %v790
    %v792 = vpop.f32.mrb[0].mxu0
    %v793 = vpop.f32.mrb[0].mxu0
    %794 = vdwg.mxu0
    %v795 = vpack.c.bf16 %v750, %v750
    %v797 = vsel %vm177, %v795, 0
    %799 = vmatprep.subr.bf16.mxu0 %v369
    %800 = vmatpush1.bf16.msra.mxu0 %v368
    %801 = vmatprep.subr.bf16.mxu0 %v371
    %802 = vmatpush1.bf16.msra.mxu0 %v370
    %803 = vmatprep.subr.bf16.mxu0 %v373
    %804 = vmatpush1.bf16.msra.mxu0 %v372
    %805 = vmatprep.subr.bf16.mxu0 %v375
    %806 = vmatpush1.bf16.msra.mxu0 %v374
    %807 = vmatprep.subr.bf16.mxu0 0
    %808 = vmatpush1.bf16.msra.mxu0 0
    %809 = vmatprep.subr.bf16.mxu0 0
    %810 = vmatpush1.bf16.msra.mxu0 0
    %811 = vmatprep.subr.bf16.mxu0 0
    %812 = vmatpush1.bf16.msra.mxu0 0
    %813 = vmatprep.subr.bf16.mxu0 0
    %814 = vmatpush1.bf16.msra.mxu0 0
    %815 = vmatprep.subr.bf16.mxu0 0
    %816 = vmatpush1.bf16.msra.mxu0 0
    %817 = vmatprep.subr.bf16.mxu0 0
    %818 = vmatpush1.bf16.msra.mxu0 0
    %819 = vmatprep.subr.bf16.mxu0 0
    %820 = vmatpush1.bf16.msra.mxu0 0
    %821 = vmatprep.subr.bf16.mxu0 0
    %822 = vmatpush1.bf16.msra.mxu0 0
    %823 = vmatprep.subr.bf16.mxu0 0
    %824 = vmatpush1.bf16.msra.mxu0 0
    %825 = vmatprep.subr.bf16.mxu0 0
    %826 = vmatpush1.bf16.msra.mxu0 0
    %827 = vmatprep.subr.bf16.mxu0 0
    %828 = vmatpush1.bf16.msra.mxu0 0
    %829 = vmatprep.subr.bf16.mxu0 0
    %830 = vmatpush1.bf16.msra.mxu0 0
    %831 = vmatprep.mubr.bf16.mxu0 0
    %832 = vmatmul.mubr.bf16.gmra.mrb[0].mxu0 %v797
    %v833 = vpop.f32.mrb[0].mxu0
    %v834 = vadd.f32 0.0, %v833
    %v835 = vpop.f32.mrb[0].mxu0
    %v836 = vadd.f32 0.0, %v835
    %v837 = vpop.f32.mrb[0].mxu0
    %v838 = vpop.f32.mrb[0].mxu0
    %839 = vdwg.mxu0
    %v840 = vadd.f32 %v789, %v834
    %v841 = vadd.f32 %v791, %v836
    %v842 = vxor.u32 %v840, 2147483648
    %v843 = vxor.u32 %v841, 2147483648
    %v844 = vmul.f32 %v842, 1.442695
    %v845 = vpow.pop %v844
    %v846 = vmul.f32 %v843, 1.442695
    %v847 = vpow.pop %v846
    %v848 = vadd.f32 %v845, 1.0
    %v849 = vadd.f32 %v847, 1.0
    %v850 = vrcp.pop %v848
    %v851 = vmul.f32 1.0, %v850
    %v852 = vrcp.pop %v849
    %v853 = vmul.f32 1.0, %v852
    %v854 = vtanh.pop %v841
    %v855 = vmul.f32 %v851, %v659
    %857 = vrot.lane.b32.xlu0 %v854, 64
    %v858 = vpop.permute.xlu0 %857
    %v860 = vmul.f32 %v851, %v858
    %862 = vrot.lane.b32.xlu0 %v860, 64
    %v863 = vpop.permute.xlu0 %862
    %v865 = vadd.f32 %v855, %v863
    %v866 = vtanh.pop %v865
    %868 = vrot.lane.b32.xlu0 %v866, 64
    %v869 = vpop.permute.xlu0 %868
    %v871 = vmul.f32 %v853, %v869
    %v872 = vpack.c.bf16 %v871, %v871
    %s873 = scalar_lea.vmem %s0, 24
    %v874 = vld [vmem:[%s873] sm:$0xff]
    %876 = vset.pattern.permute.xlu0 0
    %877 = vperm.xlu0 %876, %v874
    %v878 = vpop.permute.xlu0 %877
    %v880 = vmul.f32 %v878, %v80
    %v881 = vmul.f32 %v878, %v84
    %v882 = vadd.f32 %v92, %v880
    %v883 = vadd.f32 %v96, %v881
    %884 = vmatprep.subr.bf16.mxu0 %v162
    %885 = vmatpush1.bf16.msra.mxu0 %v161
    %886 = vmatprep.subr.bf16.mxu0 %v164
    %887 = vmatpush1.bf16.msra.mxu0 %v163
    %888 = vmatprep.subr.bf16.mxu0 %v166
    %889 = vmatpush1.bf16.msra.mxu0 %v165
    %890 = vmatprep.subr.bf16.mxu0 %v168
    %891 = vmatpush1.bf16.msra.mxu0 %v167
    %892 = vmatprep.subr.bf16.mxu0 0
    %893 = vmatpush1.bf16.msra.mxu0 0
    %894 = vmatprep.subr.bf16.mxu0 0
    %895 = vmatpush1.bf16.msra.mxu0 0
    %896 = vmatprep.subr.bf16.mxu0 0
    %897 = vmatpush1.bf16.msra.mxu0 0
    %898 = vmatprep.subr.bf16.mxu0 0
    %899 = vmatpush1.bf16.msra.mxu0 0
    %900 = vmatprep.subr.bf16.mxu0 0
    %901 = vmatpush1.bf16.msra.mxu0 0
    %902 = vmatprep.subr.bf16.mxu0 0
    %903 = vmatpush1.bf16.msra.mxu0 0
    %904 = vmatprep.subr.bf16.mxu0 0
    %905 = vmatpush1.bf16.msra.mxu0 0
    %906 = vmatprep.subr.bf16.mxu0 0
    %907 = vmatpush1.bf16.msra.mxu0 0
    %908 = vmatprep.subr.bf16.mxu0 0
    %909 = vmatpush1.bf16.msra.mxu0 0
    %910 = vmatprep.subr.bf16.mxu0 0
    %911 = vmatpush1.bf16.msra.mxu0 0
    %912 = vmatprep.subr.bf16.mxu0 0
    %913 = vmatpush1.bf16.msra.mxu0 0
    %914 = vmatprep.subr.bf16.mxu0 0
    %915 = vmatpush1.bf16.msra.mxu0 0
    %916 = vmatprep.mubr.bf16.mxu0 0
    %917 = vmatmul.mubr.bf16.gmra.mrb[0].mxu0 %v797
    %v918 = vpop.f32.mrb[0].mxu0
    %v919 = vadd.f32 0.0, %v918
    %v920 = vpop.f32.mrb[0].mxu0
    %v921 = vadd.f32 0.0, %v920
    %v922 = vpop.f32.mrb[0].mxu0
    %v923 = vpop.f32.mrb[0].mxu0
    %924 = vdwg.mxu0
    %v925 = vadd.f32 %v882, %v919
    %v926 = vadd.f32 %v883, %v921
    %v927 = vxor.u32 %v925, 2147483648
    %v928 = vxor.u32 %v926, 2147483648
    %v929 = vmul.f32 %v927, 1.442695
    %v930 = vpow.pop %v929
    %v931 = vmul.f32 %v928, 1.442695
    %v932 = vpow.pop %v931
    %v933 = vadd.f32 %v930, 1.0
    %v934 = vadd.f32 %v932, 1.0
    %v935 = vrcp.pop %v933
    %v936 = vmul.f32 1.0, %v935
    %v937 = vrcp.pop %v934
    %v938 = vmul.f32 1.0, %v937
    %v939 = vtanh.pop %v926
    %v940 = vmul.f32 %v936, %v744
    %942 = vrot.lane.b32.xlu0 %v939, 64
    %v943 = vpop.permute.xlu0 %942
    %v945 = vmul.f32 %v936, %v943
    %947 = vrot.lane.b32.xlu0 %v945, 64
    %v948 = vpop.permute.xlu0 %947
    %v950 = vadd.f32 %v940, %v948
    %v951 = vtanh.pop %v950
    %953 = vrot.lane.b32.xlu0 %v951, 64
    %v954 = vpop.permute.xlu0 %953
    %v956 = vmul.f32 %v938, %v954
    %v958 = vsel %vm177, %v872, 0
    %960 = vmatprep.subr.bf16.mxu0 %v279
    %961 = vmatpush1.bf16.msra.mxu0 %v278
    %962 = vmatprep.subr.bf16.mxu0 %v281
    %963 = vmatpush1.bf16.msra.mxu0 %v280
    %964 = vmatprep.subr.bf16.mxu0 %v283
    %965 = vmatpush1.bf16.msra.mxu0 %v282
    %966 = vmatprep.subr.bf16.mxu0 %v285
    %967 = vmatpush1.bf16.msra.mxu0 %v284
    %968 = vmatprep.subr.bf16.mxu0 0
    %969 = vmatpush1.bf16.msra.mxu0 0
    %970 = vmatprep.subr.bf16.mxu0 0
    %971 = vmatpush1.bf16.msra.mxu0 0
    %972 = vmatprep.subr.bf16.mxu0 0
    %973 = vmatpush1.bf16.msra.mxu0 0
    %974 = vmatprep.subr.bf16.mxu0 0
    %975 = vmatpush1.bf16.msra.mxu0 0
    %976 = vmatprep.subr.bf16.mxu0 0
    %977 = vmatpush1.bf16.msra.mxu0 0
    %978 = vmatprep.subr.bf16.mxu0 0
    %979 = vmatpush1.bf16.msra.mxu0 0
    %980 = vmatprep.subr.bf16.mxu0 0
    %981 = vmatpush1.bf16.msra.mxu0 0
    %982 = vmatprep.subr.bf16.mxu0 0
    %983 = vmatpush1.bf16.msra.mxu0 0
    %984 = vmatprep.subr.bf16.mxu0 0
    %985 = vmatpush1.bf16.msra.mxu0 0
    %986 = vmatprep.subr.bf16.mxu0 0
    %987 = vmatpush1.bf16.msra.mxu0 0
    %988 = vmatprep.subr.bf16.mxu0 0
    %989 = vmatpush1.bf16.msra.mxu0 0
    %990 = vmatprep.subr.bf16.mxu0 0
    %991 = vmatpush1.bf16.msra.mxu0 0
    %992 = vmatprep.mubr.bf16.mxu0 0
    %993 = vmatmul.mubr.bf16.gmra.mrb[0].mxu0 %v958
    %v994 = vpop.f32.mrb[0].mxu0
    %v995 = vadd.f32 %v104, %v994
    %v996 = vpop.f32.mrb[0].mxu0
    %v997 = vadd.f32 %v108, %v996
    %v998 = vpop.f32.mrb[0].mxu0
    %v999 = vpop.f32.mrb[0].mxu0
    %1000 = vdwg.mxu0
    %v1001 = vpack.c.bf16 %v956, %v956
    %v1003 = vsel %vm177, %v1001, 0
    %1005 = vmatprep.subr.bf16.mxu0 %v369
    %1006 = vmatpush1.bf16.msra.mxu0 %v368
    %1007 = vmatprep.subr.bf16.mxu0 %v371
    %1008 = vmatpush1.bf16.msra.mxu0 %v370
    %1009 = vmatprep.subr.bf16.mxu0 %v373
    %1010 = vmatpush1.bf16.msra.mxu0 %v372
    %1011 = vmatprep.subr.bf16.mxu0 %v375
    %1012 = vmatpush1.bf16.msra.mxu0 %v374
    %1013 = vmatprep.subr.bf16.mxu0 0
    %1014 = vmatpush1.bf16.msra.mxu0 0
    %1015 = vmatprep.subr.bf16.mxu0 0
    %1016 = vmatpush1.bf16.msra.mxu0 0
    %1017 = vmatprep.subr.bf16.mxu0 0
    %1018 = vmatpush1.bf16.msra.mxu0 0
    %1019 = vmatprep.subr.bf16.mxu0 0
    %1020 = vmatpush1.bf16.msra.mxu0 0
    %1021 = vmatprep.subr.bf16.mxu0 0
    %1022 = vmatpush1.bf16.msra.mxu0 0
    %1023 = vmatprep.subr.bf16.mxu0 0
    %1024 = vmatpush1.bf16.msra.mxu0 0
    %1025 = vmatprep.subr.bf16.mxu0 0
    %1026 = vmatpush1.bf16.msra.mxu0 0
    %1027 = vmatprep.subr.bf16.mxu0 0
    %1028 = vmatpush1.bf16.msra.mxu0 0
    %1029 = vmatprep.subr.bf16.mxu0 0
    %1030 = vmatpush1.bf16.msra.mxu0 0
    %1031 = vmatprep.subr.bf16.mxu0 0
    %1032 = vmatpush1.bf16.msra.mxu0 0
    %1033 = vmatprep.subr.bf16.mxu0 0
    %1034 = vmatpush1.bf16.msra.mxu0 0
    %1035 = vmatprep.subr.bf16.mxu0 0
    %1036 = vmatpush1.bf16.msra.mxu0 0
    %1037 = vmatprep.mubr.bf16.mxu0 0
    %1038 = vmatmul.mubr.bf16.gmra.mrb[0].mxu0 %v1003
    %v1039 = vpop.f32.mrb[0].mxu0
    %v1040 = vadd.f32 0.0, %v1039
    %v1041 = vpop.f32.mrb[0].mxu0
    %v1042 = vadd.f32 0.0, %v1041
    %v1043 = vpop.f32.mrb[0].mxu0
    %v1044 = vpop.f32.mrb[0].mxu0
    %1045 = vdwg.mxu0
    %v1046 = vadd.f32 %v995, %v1040
    %v1047 = vadd.f32 %v997, %v1042
    %v1048 = vxor.u32 %v1046, 2147483648
    %v1049 = vxor.u32 %v1047, 2147483648
    %v1050 = vmul.f32 %v1048, 1.442695
    %v1051 = vpow.pop %v1050
    %v1052 = vmul.f32 %v1049, 1.442695
    %v1053 = vpow.pop %v1052
    %v1054 = vadd.f32 %v1051, 1.0
    %v1055 = vadd.f32 %v1053, 1.0
    %v1056 = vrcp.pop %v1054
    %v1057 = vmul.f32 1.0, %v1056
    %v1058 = vrcp.pop %v1055
    %v1059 = vmul.f32 1.0, %v1058
    %v1060 = vtanh.pop %v1047
    %v1061 = vmul.f32 %v1057, %v865
    %1063 = vrot.lane.b32.xlu0 %v1060, 64
    %v1064 = vpop.permute.xlu0 %1063
    %v1066 = vmul.f32 %v1057, %v1064
    %1068 = vrot.lane.b32.xlu0 %v1066, 64
    %v1069 = vpop.permute.xlu0 %1068
    %v1071 = vadd.f32 %v1061, %v1069
    %v1072 = vtanh.pop %v1071
    %1074 = vrot.lane.b32.xlu0 %v1072, 64
    %v1075 = vpop.permute.xlu0 %1074
    %v1077 = vmul.f32 %v1059, %v1075
    %v1078 = vpack.c.bf16 %v1077, %v1077
    %s1079 = scalar_lea.vmem %s0, 32
    %v1080 = vld [vmem:[%s1079] sm:$0xff]
    %1082 = vset.pattern.permute.xlu0 0
    %1083 = vperm.xlu0 %1082, %v1080
    %v1084 = vpop.permute.xlu0 %1083
    %v1086 = vmul.f32 %v1084, %v80
    %v1087 = vmul.f32 %v1084, %v84
    %v1088 = vadd.f32 %v92, %v1086
    %v1089 = vadd.f32 %v96, %v1087
    %1090 = vmatprep.subr.bf16.mxu0 %v162
    %1091 = vmatpush1.bf16.msra.mxu0 %v161
    %1092 = vmatprep.subr.bf16.mxu0 %v164
    %1093 = vmatpush1.bf16.msra.mxu0 %v163
    %1094 = vmatprep.subr.bf16.mxu0 %v166
    %1095 = vmatpush1.bf16.msra.mxu0 %v165
    %1096 = vmatprep.subr.bf16.mxu0 %v168
    %1097 = vmatpush1.bf16.msra.mxu0 %v167
    %1098 = vmatprep.subr.bf16.mxu0 0
    %1099 = vmatpush1.bf16.msra.mxu0 0
    %1100 = vmatprep.subr.bf16.mxu0 0
    %1101 = vmatpush1.bf16.msra.mxu0 0
    %1102 = vmatprep.subr.bf16.mxu0 0
    %1103 = vmatpush1.bf16.msra.mxu0 0
    %1104 = vmatprep.subr.bf16.mxu0 0
    %1105 = vmatpush1.bf16.msra.mxu0 0
    %1106 = vmatprep.subr.bf16.mxu0 0
    %1107 = vmatpush1.bf16.msra.mxu0 0
    %1108 = vmatprep.subr.bf16.mxu0 0
    %1109 = vmatpush1.bf16.msra.mxu0 0
    %1110 = vmatprep.subr.bf16.mxu0 0
    %1111 = vmatpush1.bf16.msra.mxu0 0
    %1112 = vmatprep.subr.bf16.mxu0 0
    %1113 = vmatpush1.bf16.msra.mxu0 0
    %1114 = vmatprep.subr.bf16.mxu0 0
    %1115 = vmatpush1.bf16.msra.mxu0 0
    %1116 = vmatprep.subr.bf16.mxu0 0
    %1117 = vmatpush1.bf16.msra.mxu0 0
    %1118 = vmatprep.subr.bf16.mxu0 0
    %1119 = vmatpush1.bf16.msra.mxu0 0
    %1120 = vmatprep.subr.bf16.mxu0 0
    %1121 = vmatpush1.bf16.msra.mxu0 0
    %1122 = vmatprep.mubr.bf16.mxu0 0
    %1123 = vmatmul.mubr.bf16.gmra.mrb[0].mxu0 %v1003
    %v1124 = vpop.f32.mrb[0].mxu0
    %v1125 = vadd.f32 0.0, %v1124
    %v1126 = vpop.f32.mrb[0].mxu0
    %v1127 = vadd.f32 0.0, %v1126
    %v1128 = vpop.f32.mrb[0].mxu0
    %v1129 = vpop.f32.mrb[0].mxu0
    %1130 = vdwg.mxu0
    %v1131 = vadd.f32 %v1088, %v1125
    %v1132 = vadd.f32 %v1089, %v1127
    %v1133 = vxor.u32 %v1131, 2147483648
    %v1134 = vxor.u32 %v1132, 2147483648
    %v1135 = vmul.f32 %v1133, 1.442695
    %v1136 = vpow.pop %v1135
    %v1137 = vmul.f32 %v1134, 1.442695
    %v1138 = vpow.pop %v1137
    %v1139 = vadd.f32 %v1136, 1.0
    %v1140 = vadd.f32 %v1138, 1.0
    %v1141 = vrcp.pop %v1139
    %v1142 = vmul.f32 1.0, %v1141
    %v1143 = vrcp.pop %v1140
    %v1144 = vmul.f32 1.0, %v1143
    %v1145 = vtanh.pop %v1132
    %v1146 = vmul.f32 %v1142, %v950
    %1148 = vrot.lane.b32.xlu0 %v1145, 64
    %v1149 = vpop.permute.xlu0 %1148
    %v1151 = vmul.f32 %v1142, %v1149
    %1153 = vrot.lane.b32.xlu0 %v1151, 64
    %v1154 = vpop.permute.xlu0 %1153
    %v1156 = vadd.f32 %v1146, %v1154
    %v1157 = vtanh.pop %v1156
    %1159 = vrot.lane.b32.xlu0 %v1157, 64
    %v1160 = vpop.permute.xlu0 %1159
    %v1162 = vmul.f32 %v1144, %v1160
    %v1164 = vsel %vm177, %v1078, 0
    %1166 = vmatprep.subr.bf16.mxu0 %v279
    %1167 = vmatpush1.bf16.msra.mxu0 %v278
    %1168 = vmatprep.subr.bf16.mxu0 %v281
    %1169 = vmatpush1.bf16.msra.mxu0 %v280
    %1170 = vmatprep.subr.bf16.mxu0 %v283
    %1171 = vmatpush1.bf16.msra.mxu0 %v282
    %1172 = vmatprep.subr.bf16.mxu0 %v285
    %1173 = vmatpush1.bf16.msra.mxu0 %v284
    %1174 = vmatprep.subr.bf16.mxu0 0
    %1175 = vmatpush1.bf16.msra.mxu0 0
    %1176 = vmatprep.subr.bf16.mxu0 0
    %1177 = vmatpush1.bf16.msra.mxu0 0
    %1178 = vmatprep.subr.bf16.mxu0 0
    %1179 = vmatpush1.bf16.msra.mxu0 0
    %1180 = vmatprep.subr.bf16.mxu0 0
    %1181 = vmatpush1.bf16.msra.mxu0 0
    %1182 = vmatprep.subr.bf16.mxu0 0
    %1183 = vmatpush1.bf16.msra.mxu0 0
    %1184 = vmatprep.subr.bf16.mxu0 0
    %1185 = vmatpush1.bf16.msra.mxu0 0
    %1186 = vmatprep.subr.bf16.mxu0 0
    %1187 = vmatpush1.bf16.msra.mxu0 0
    %1188 = vmatprep.subr.bf16.mxu0 0
    %1189 = vmatpush1.bf16.msra.mxu0 0
    %1190 = vmatprep.subr.bf16.mxu0 0
    %1191 = vmatpush1.bf16.msra.mxu0 0
    %1192 = vmatprep.subr.bf16.mxu0 0
    %1193 = vmatpush1.bf16.msra.mxu0 0
    %1194 = vmatprep.subr.bf16.mxu0 0
    %1195 = vmatpush1.bf16.msra.mxu0 0
    %1196 = vmatprep.subr.bf16.mxu0 0
    %1197 = vmatpush1.bf16.msra.mxu0 0
    %1198 = vmatprep.mubr.bf16.mxu0 0
    %1199 = vmatmul.mubr.bf16.gmra.mrb[0].mxu0 %v1164
    %v1200 = vpop.f32.mrb[0].mxu0
    %v1201 = vadd.f32 %v104, %v1200
    %v1202 = vpop.f32.mrb[0].mxu0
    %v1203 = vadd.f32 %v108, %v1202
    %v1204 = vpop.f32.mrb[0].mxu0
    %v1205 = vpop.f32.mrb[0].mxu0
    %1206 = vdwg.mxu0
    %v1207 = vpack.c.bf16 %v1162, %v1162
    %v1209 = vsel %vm177, %v1207, 0
    %1211 = vmatprep.subr.bf16.mxu0 %v369
    %1212 = vmatpush1.bf16.msra.mxu0 %v368
    %1213 = vmatprep.subr.bf16.mxu0 %v371
    %1214 = vmatpush1.bf16.msra.mxu0 %v370
    %1215 = vmatprep.subr.bf16.mxu0 %v373
    %1216 = vmatpush1.bf16.msra.mxu0 %v372
    %1217 = vmatprep.subr.bf16.mxu0 %v375
    %1218 = vmatpush1.bf16.msra.mxu0 %v374
    %1219 = vmatprep.subr.bf16.mxu0 0
    %1220 = vmatpush1.bf16.msra.mxu0 0
    %1221 = vmatprep.subr.bf16.mxu0 0
    %1222 = vmatpush1.bf16.msra.mxu0 0
    %1223 = vmatprep.subr.bf16.mxu0 0
    %1224 = vmatpush1.bf16.msra.mxu0 0
    %1225 = vmatprep.subr.bf16.mxu0 0
    %1226 = vmatpush1.bf16.msra.mxu0 0
    %1227 = vmatprep.subr.bf16.mxu0 0
    %1228 = vmatpush1.bf16.msra.mxu0 0
    %1229 = vmatprep.subr.bf16.mxu0 0
    %1230 = vmatpush1.bf16.msra.mxu0 0
    %1231 = vmatprep.subr.bf16.mxu0 0
    %1232 = vmatpush1.bf16.msra.mxu0 0
    %1233 = vmatprep.subr.bf16.mxu0 0
    %1234 = vmatpush1.bf16.msra.mxu0 0
    %1235 = vmatprep.subr.bf16.mxu0 0
    %1236 = vmatpush1.bf16.msra.mxu0 0
    %1237 = vmatprep.subr.bf16.mxu0 0
    %1238 = vmatpush1.bf16.msra.mxu0 0
    %1239 = vmatprep.subr.bf16.mxu0 0
    %1240 = vmatpush1.bf16.msra.mxu0 0
    %1241 = vmatprep.subr.bf16.mxu0 0
    %1242 = vmatpush1.bf16.msra.mxu0 0
    %1243 = vmatprep.mubr.bf16.mxu0 0
    %1244 = vmatmul.mubr.bf16.gmra.mrb[0].mxu0 %v1209
    %v1245 = vpop.f32.mrb[0].mxu0
    %v1246 = vadd.f32 0.0, %v1245
    %v1247 = vpop.f32.mrb[0].mxu0
    %v1248 = vadd.f32 0.0, %v1247
    %v1249 = vpop.f32.mrb[0].mxu0
    %v1250 = vpop.f32.mrb[0].mxu0
    %1251 = vdwg.mxu0
    %v1252 = vadd.f32 %v1201, %v1246
    %v1253 = vadd.f32 %v1203, %v1248
    %v1254 = vxor.u32 %v1252, 2147483648
    %v1255 = vxor.u32 %v1253, 2147483648
    %v1256 = vmul.f32 %v1254, 1.442695
    %v1257 = vpow.pop %v1256
    %v1258 = vmul.f32 %v1255, 1.442695
    %v1259 = vpow.pop %v1258
    %v1260 = vadd.f32 %v1257, 1.0
    %v1261 = vadd.f32 %v1259, 1.0
    %v1262 = vrcp.pop %v1260
    %v1263 = vmul.f32 1.0, %v1262
    %v1264 = vrcp.pop %v1261
    %v1265 = vmul.f32 1.0, %v1264
    %v1266 = vtanh.pop %v1253
    %v1267 = vmul.f32 %v1263, %v1071
    %1269 = vrot.lane.b32.xlu0 %v1266, 64
    %v1270 = vpop.permute.xlu0 %1269
    %v1272 = vmul.f32 %v1263, %v1270
    %1274 = vrot.lane.b32.xlu0 %v1272, 64
    %v1275 = vpop.permute.xlu0 %1274
    %v1277 = vadd.f32 %v1267, %v1275
    %v1278 = vtanh.pop %v1277
    %1280 = vrot.lane.b32.xlu0 %v1278, 64
    %v1281 = vpop.permute.xlu0 %1280
    %v1283 = vmul.f32 %v1265, %v1281
    %v1284 = vpack.c.bf16 %v1283, %v1283
    %s1285 = scalar_lea.vmem %s0, 40
    %v1286 = vld [vmem:[%s1285] sm:$0xff]
    %1288 = vset.pattern.permute.xlu0 0
    %1289 = vperm.xlu0 %1288, %v1286
    %v1290 = vpop.permute.xlu0 %1289
    %v1292 = vmul.f32 %v1290, %v80
    %v1293 = vmul.f32 %v1290, %v84
    %v1294 = vadd.f32 %v92, %v1292
    %v1295 = vadd.f32 %v96, %v1293
    %1296 = vmatprep.subr.bf16.mxu0 %v162
    %1297 = vmatpush1.bf16.msra.mxu0 %v161
    %1298 = vmatprep.subr.bf16.mxu0 %v164
    %1299 = vmatpush1.bf16.msra.mxu0 %v163
    %1300 = vmatprep.subr.bf16.mxu0 %v166
    %1301 = vmatpush1.bf16.msra.mxu0 %v165
    %1302 = vmatprep.subr.bf16.mxu0 %v168
    %1303 = vmatpush1.bf16.msra.mxu0 %v167
    %1304 = vmatprep.subr.bf16.mxu0 0
    %1305 = vmatpush1.bf16.msra.mxu0 0
    %1306 = vmatprep.subr.bf16.mxu0 0
    %1307 = vmatpush1.bf16.msra.mxu0 0
    %1308 = vmatprep.subr.bf16.mxu0 0
    %1309 = vmatpush1.bf16.msra.mxu0 0
    %1310 = vmatprep.subr.bf16.mxu0 0
    %1311 = vmatpush1.bf16.msra.mxu0 0
    %1312 = vmatprep.subr.bf16.mxu0 0
    %1313 = vmatpush1.bf16.msra.mxu0 0
    %1314 = vmatprep.subr.bf16.mxu0 0
    %1315 = vmatpush1.bf16.msra.mxu0 0
    %1316 = vmatprep.subr.bf16.mxu0 0
    %1317 = vmatpush1.bf16.msra.mxu0 0
    %1318 = vmatprep.subr.bf16.mxu0 0
    %1319 = vmatpush1.bf16.msra.mxu0 0
    %1320 = vmatprep.subr.bf16.mxu0 0
    %1321 = vmatpush1.bf16.msra.mxu0 0
    %1322 = vmatprep.subr.bf16.mxu0 0
    %1323 = vmatpush1.bf16.msra.mxu0 0
    %1324 = vmatprep.subr.bf16.mxu0 0
    %1325 = vmatpush1.bf16.msra.mxu0 0
    %1326 = vmatprep.subr.bf16.mxu0 0
    %1327 = vmatpush1.bf16.msra.mxu0 0
    %1328 = vmatprep.mubr.bf16.mxu0 0
    %1329 = vmatmul.mubr.bf16.gmra.mrb[0].mxu0 %v1209
    %v1330 = vpop.f32.mrb[0].mxu0
    %v1331 = vadd.f32 0.0, %v1330
    %v1332 = vpop.f32.mrb[0].mxu0
    %v1333 = vadd.f32 0.0, %v1332
    %v1334 = vpop.f32.mrb[0].mxu0
    %v1335 = vpop.f32.mrb[0].mxu0
    %1336 = vdwg.mxu0
    %v1337 = vadd.f32 %v1294, %v1331
    %v1338 = vadd.f32 %v1295, %v1333
    %v1339 = vxor.u32 %v1337, 2147483648
    %v1340 = vxor.u32 %v1338, 2147483648
    %v1341 = vmul.f32 %v1339, 1.442695
    %v1342 = vpow.pop %v1341
    %v1343 = vmul.f32 %v1340, 1.442695
    %v1344 = vpow.pop %v1343
    %v1345 = vadd.f32 %v1342, 1.0
    %v1346 = vadd.f32 %v1344, 1.0
    %v1347 = vrcp.pop %v1345
    %v1348 = vmul.f32 1.0, %v1347
    %v1349 = vrcp.pop %v1346
    %v1350 = vmul.f32 1.0, %v1349
    %v1351 = vtanh.pop %v1338
    %v1352 = vmul.f32 %v1348, %v1156
    %1354 = vrot.lane.b32.xlu0 %v1351, 64
    %v1355 = vpop.permute.xlu0 %1354
    %v1357 = vmul.f32 %v1348, %v1355
    %1359 = vrot.lane.b32.xlu0 %v1357, 64
    %v1360 = vpop.permute.xlu0 %1359
    %v1362 = vadd.f32 %v1352, %v1360
    %v1363 = vtanh.pop %v1362
    %1365 = vrot.lane.b32.xlu0 %v1363, 64
    %v1366 = vpop.permute.xlu0 %1365
    %v1368 = vmul.f32 %v1350, %v1366
    %v1370 = vsel %vm177, %v1284, 0
    %1372 = vmatprep.subr.bf16.mxu0 %v279
    %1373 = vmatpush1.bf16.msra.mxu0 %v278
    %1374 = vmatprep.subr.bf16.mxu0 %v281
    %1375 = vmatpush1.bf16.msra.mxu0 %v280
    %1376 = vmatprep.subr.bf16.mxu0 %v283
    %1377 = vmatpush1.bf16.msra.mxu0 %v282
    %1378 = vmatprep.subr.bf16.mxu0 %v285
    %1379 = vmatpush1.bf16.msra.mxu0 %v284
    %1380 = vmatprep.subr.bf16.mxu0 0
    %1381 = vmatpush1.bf16.msra.mxu0 0
    %1382 = vmatprep.subr.bf16.mxu0 0
    %1383 = vmatpush1.bf16.msra.mxu0 0
    %1384 = vmatprep.subr.bf16.mxu0 0
    %1385 = vmatpush1.bf16.msra.mxu0 0
    %1386 = vmatprep.subr.bf16.mxu0 0
    %1387 = vmatpush1.bf16.msra.mxu0 0
    %1388 = vmatprep.subr.bf16.mxu0 0
    %1389 = vmatpush1.bf16.msra.mxu0 0
    %1390 = vmatprep.subr.bf16.mxu0 0
    %1391 = vmatpush1.bf16.msra.mxu0 0
    %1392 = vmatprep.subr.bf16.mxu0 0
    %1393 = vmatpush1.bf16.msra.mxu0 0
    %1394 = vmatprep.subr.bf16.mxu0 0
    %1395 = vmatpush1.bf16.msra.mxu0 0
    %1396 = vmatprep.subr.bf16.mxu0 0
    %1397 = vmatpush1.bf16.msra.mxu0 0
    %1398 = vmatprep.subr.bf16.mxu0 0
    %1399 = vmatpush1.bf16.msra.mxu0 0
    %1400 = vmatprep.subr.bf16.mxu0 0
    %1401 = vmatpush1.bf16.msra.mxu0 0
    %1402 = vmatprep.subr.bf16.mxu0 0
    %1403 = vmatpush1.bf16.msra.mxu0 0
    %1404 = vmatprep.mubr.bf16.mxu0 0
    %1405 = vmatmul.mubr.bf16.gmra.mrb[0].mxu0 %v1370
    %v1406 = vpop.f32.mrb[0].mxu0
    %v1407 = vadd.f32 %v104, %v1406
    %v1408 = vpop.f32.mrb[0].mxu0
    %v1409 = vadd.f32 %v108, %v1408
    %v1410 = vpop.f32.mrb[0].mxu0
    %v1411 = vpop.f32.mrb[0].mxu0
    %1412 = vdwg.mxu0
    %v1413 = vpack.c.bf16 %v1368, %v1368
    %v1415 = vsel %vm177, %v1413, 0
    %1417 = vmatprep.subr.bf16.mxu0 %v369
    %1418 = vmatpush1.bf16.msra.mxu0 %v368
    %1419 = vmatprep.subr.bf16.mxu0 %v371
    %1420 = vmatpush1.bf16.msra.mxu0 %v370
    %1421 = vmatprep.subr.bf16.mxu0 %v373
    %1422 = vmatpush1.bf16.msra.mxu0 %v372
    %1423 = vmatprep.subr.bf16.mxu0 %v375
    %1424 = vmatpush1.bf16.msra.mxu0 %v374
    %1425 = vmatprep.subr.bf16.mxu0 0
    %1426 = vmatpush1.bf16.msra.mxu0 0
    %1427 = vmatprep.subr.bf16.mxu0 0
    %1428 = vmatpush1.bf16.msra.mxu0 0
    %1429 = vmatprep.subr.bf16.mxu0 0
    %1430 = vmatpush1.bf16.msra.mxu0 0
    %1431 = vmatprep.subr.bf16.mxu0 0
    %1432 = vmatpush1.bf16.msra.mxu0 0
    %1433 = vmatprep.subr.bf16.mxu0 0
    %1434 = vmatpush1.bf16.msra.mxu0 0
    %1435 = vmatprep.subr.bf16.mxu0 0
    %1436 = vmatpush1.bf16.msra.mxu0 0
    %1437 = vmatprep.subr.bf16.mxu0 0
    %1438 = vmatpush1.bf16.msra.mxu0 0
    %1439 = vmatprep.subr.bf16.mxu0 0
    %1440 = vmatpush1.bf16.msra.mxu0 0
    %1441 = vmatprep.subr.bf16.mxu0 0
    %1442 = vmatpush1.bf16.msra.mxu0 0
    %1443 = vmatprep.subr.bf16.mxu0 0
    %1444 = vmatpush1.bf16.msra.mxu0 0
    %1445 = vmatprep.subr.bf16.mxu0 0
    %1446 = vmatpush1.bf16.msra.mxu0 0
    %1447 = vmatprep.subr.bf16.mxu0 0
    %1448 = vmatpush1.bf16.msra.mxu0 0
    %1449 = vmatprep.mubr.bf16.mxu0 0
    %1450 = vmatmul.mubr.bf16.gmra.mrb[0].mxu0 %v1415
    %v1451 = vpop.f32.mrb[0].mxu0
    %v1452 = vadd.f32 0.0, %v1451
    %v1453 = vpop.f32.mrb[0].mxu0
    %v1454 = vadd.f32 0.0, %v1453
    %v1455 = vpop.f32.mrb[0].mxu0
    %v1456 = vpop.f32.mrb[0].mxu0
    %1457 = vdwg.mxu0
    %v1458 = vadd.f32 %v1407, %v1452
    %v1459 = vadd.f32 %v1409, %v1454
    %v1460 = vxor.u32 %v1458, 2147483648
    %v1461 = vxor.u32 %v1459, 2147483648
    %v1462 = vmul.f32 %v1460, 1.442695
    %v1463 = vpow.pop %v1462
    %v1464 = vmul.f32 %v1461, 1.442695
    %v1465 = vpow.pop %v1464
    %v1466 = vadd.f32 %v1463, 1.0
    %v1467 = vadd.f32 %v1465, 1.0
    %v1468 = vrcp.pop %v1466
    %v1469 = vmul.f32 1.0, %v1468
    %v1470 = vrcp.pop %v1467
    %v1471 = vmul.f32 1.0, %v1470
    %v1472 = vtanh.pop %v1459
    %v1473 = vmul.f32 %v1469, %v1277
    %1475 = vrot.lane.b32.xlu0 %v1472, 64
    %v1476 = vpop.permute.xlu0 %1475
    %v1478 = vmul.f32 %v1469, %v1476
    %1480 = vrot.lane.b32.xlu0 %v1478, 64
    %v1481 = vpop.permute.xlu0 %1480
    %v1483 = vadd.f32 %v1473, %v1481
    %v1484 = vtanh.pop %v1483
    %1486 = vrot.lane.b32.xlu0 %v1484, 64
    %v1487 = vpop.permute.xlu0 %1486
    %v1489 = vmul.f32 %v1471, %v1487
    %v1490 = vpack.c.bf16 %v1489, %v1489
    %s1491 = scalar_lea.vmem %s0, 48
    %v1492 = vld [vmem:[%s1491] sm:$0xff]
    %1494 = vset.pattern.permute.xlu0 0
    %1495 = vperm.xlu0 %1494, %v1492
    %v1496 = vpop.permute.xlu0 %1495
    %v1498 = vmul.f32 %v1496, %v80
    %v1499 = vmul.f32 %v1496, %v84
    %v1500 = vadd.f32 %v92, %v1498
    %v1501 = vadd.f32 %v96, %v1499
    %1502 = vmatprep.subr.bf16.mxu0 %v162
    %1503 = vmatpush1.bf16.msra.mxu0 %v161
    %1504 = vmatprep.subr.bf16.mxu0 %v164
    %1505 = vmatpush1.bf16.msra.mxu0 %v163
    %1506 = vmatprep.subr.bf16.mxu0 %v166
    %1507 = vmatpush1.bf16.msra.mxu0 %v165
    %1508 = vmatprep.subr.bf16.mxu0 %v168
    %1509 = vmatpush1.bf16.msra.mxu0 %v167
    %1510 = vmatprep.subr.bf16.mxu0 0
    %1511 = vmatpush1.bf16.msra.mxu0 0
    %1512 = vmatprep.subr.bf16.mxu0 0
    %1513 = vmatpush1.bf16.msra.mxu0 0
    %1514 = vmatprep.subr.bf16.mxu0 0
    %1515 = vmatpush1.bf16.msra.mxu0 0
    %1516 = vmatprep.subr.bf16.mxu0 0
    %1517 = vmatpush1.bf16.msra.mxu0 0
    %1518 = vmatprep.subr.bf16.mxu0 0
    %1519 = vmatpush1.bf16.msra.mxu0 0
    %1520 = vmatprep.subr.bf16.mxu0 0
    %1521 = vmatpush1.bf16.msra.mxu0 0
    %1522 = vmatprep.subr.bf16.mxu0 0
    %1523 = vmatpush1.bf16.msra.mxu0 0
    %1524 = vmatprep.subr.bf16.mxu0 0
    %1525 = vmatpush1.bf16.msra.mxu0 0
    %1526 = vmatprep.subr.bf16.mxu0 0
    %1527 = vmatpush1.bf16.msra.mxu0 0
    %1528 = vmatprep.subr.bf16.mxu0 0
    %1529 = vmatpush1.bf16.msra.mxu0 0
    %1530 = vmatprep.subr.bf16.mxu0 0
    %1531 = vmatpush1.bf16.msra.mxu0 0
    %1532 = vmatprep.subr.bf16.mxu0 0
    %1533 = vmatpush1.bf16.msra.mxu0 0
    %1534 = vmatprep.mubr.bf16.mxu0 0
    %1535 = vmatmul.mubr.bf16.gmra.mrb[0].mxu0 %v1415
    %v1536 = vpop.f32.mrb[0].mxu0
    %v1537 = vadd.f32 0.0, %v1536
    %v1538 = vpop.f32.mrb[0].mxu0
    %v1539 = vadd.f32 0.0, %v1538
    %v1540 = vpop.f32.mrb[0].mxu0
    %v1541 = vpop.f32.mrb[0].mxu0
    %1542 = vdwg.mxu0
    %v1543 = vadd.f32 %v1500, %v1537
    %v1544 = vadd.f32 %v1501, %v1539
    %v1545 = vxor.u32 %v1543, 2147483648
    %v1546 = vxor.u32 %v1544, 2147483648
    %v1547 = vmul.f32 %v1545, 1.442695
    %v1548 = vpow.pop %v1547
    %v1549 = vmul.f32 %v1546, 1.442695
    %v1550 = vpow.pop %v1549
    %v1551 = vadd.f32 %v1548, 1.0
    %v1552 = vadd.f32 %v1550, 1.0
    %v1553 = vrcp.pop %v1551
    %v1554 = vmul.f32 1.0, %v1553
    %v1555 = vrcp.pop %v1552
    %v1556 = vmul.f32 1.0, %v1555
    %v1557 = vtanh.pop %v1544
    %v1558 = vmul.f32 %v1554, %v1362
    %1560 = vrot.lane.b32.xlu0 %v1557, 64
    %v1561 = vpop.permute.xlu0 %1560
    %v1563 = vmul.f32 %v1554, %v1561
    %1565 = vrot.lane.b32.xlu0 %v1563, 64
    %v1566 = vpop.permute.xlu0 %1565
    %v1568 = vadd.f32 %v1558, %v1566
    %v1569 = vtanh.pop %v1568
    %1571 = vrot.lane.b32.xlu0 %v1569, 64
    %v1572 = vpop.permute.xlu0 %1571
    %v1574 = vmul.f32 %v1556, %v1572
    %v1576 = vsel %vm177, %v1490, 0
    %1578 = vmatprep.subr.bf16.mxu0 %v279
    %1579 = vmatpush1.bf16.msra.mxu0 %v278
    %1580 = vmatprep.subr.bf16.mxu0 %v281
    %1581 = vmatpush1.bf16.msra.mxu0 %v280
    %1582 = vmatprep.subr.bf16.mxu0 %v283
    %1583 = vmatpush1.bf16.msra.mxu0 %v282
    %1584 = vmatprep.subr.bf16.mxu0 %v285
    %1585 = vmatpush1.bf16.msra.mxu0 %v284
    %1586 = vmatprep.subr.bf16.mxu0 0
    %1587 = vmatpush1.bf16.msra.mxu0 0
    %1588 = vmatprep.subr.bf16.mxu0 0
    %1589 = vmatpush1.bf16.msra.mxu0 0
    %1590 = vmatprep.subr.bf16.mxu0 0
    %1591 = vmatpush1.bf16.msra.mxu0 0
    %1592 = vmatprep.subr.bf16.mxu0 0
    %1593 = vmatpush1.bf16.msra.mxu0 0
    %1594 = vmatprep.subr.bf16.mxu0 0
    %1595 = vmatpush1.bf16.msra.mxu0 0
    %1596 = vmatprep.subr.bf16.mxu0 0
    %1597 = vmatpush1.bf16.msra.mxu0 0
    %1598 = vmatprep.subr.bf16.mxu0 0
    %1599 = vmatpush1.bf16.msra.mxu0 0
    %1600 = vmatprep.subr.bf16.mxu0 0
    %1601 = vmatpush1.bf16.msra.mxu0 0
    %1602 = vmatprep.subr.bf16.mxu0 0
    %1603 = vmatpush1.bf16.msra.mxu0 0
    %1604 = vmatprep.subr.bf16.mxu0 0
    %1605 = vmatpush1.bf16.msra.mxu0 0
    %1606 = vmatprep.subr.bf16.mxu0 0
    %1607 = vmatpush1.bf16.msra.mxu0 0
    %1608 = vmatprep.subr.bf16.mxu0 0
    %1609 = vmatpush1.bf16.msra.mxu0 0
    %1610 = vmatprep.mubr.bf16.mxu0 0
    %1611 = vmatmul.mubr.bf16.gmra.mrb[0].mxu0 %v1576
    %v1612 = vpop.f32.mrb[0].mxu0
    %v1613 = vadd.f32 %v104, %v1612
    %v1614 = vpop.f32.mrb[0].mxu0
    %v1615 = vadd.f32 %v108, %v1614
    %v1616 = vpop.f32.mrb[0].mxu0
    %v1617 = vpop.f32.mrb[0].mxu0
    %1618 = vdwg.mxu0
    %v1619 = vpack.c.bf16 %v1574, %v1574
    %v1621 = vsel %vm177, %v1619, 0
    %1623 = vmatprep.subr.bf16.mxu0 %v369
    %1624 = vmatpush1.bf16.msra.mxu0 %v368
    %1625 = vmatprep.subr.bf16.mxu0 %v371
    %1626 = vmatpush1.bf16.msra.mxu0 %v370
    %1627 = vmatprep.subr.bf16.mxu0 %v373
    %1628 = vmatpush1.bf16.msra.mxu0 %v372
    %1629 = vmatprep.subr.bf16.mxu0 %v375
    %1630 = vmatpush1.bf16.msra.mxu0 %v374
    %1631 = vmatprep.subr.bf16.mxu0 0
    %1632 = vmatpush1.bf16.msra.mxu0 0
    %1633 = vmatprep.subr.bf16.mxu0 0
    %1634 = vmatpush1.bf16.msra.mxu0 0
    %1635 = vmatprep.subr.bf16.mxu0 0
    %1636 = vmatpush1.bf16.msra.mxu0 0
    %1637 = vmatprep.subr.bf16.mxu0 0
    %1638 = vmatpush1.bf16.msra.mxu0 0
    %1639 = vmatprep.subr.bf16.mxu0 0
    %1640 = vmatpush1.bf16.msra.mxu0 0
    %1641 = vmatprep.subr.bf16.mxu0 0
    %1642 = vmatpush1.bf16.msra.mxu0 0
    %1643 = vmatprep.subr.bf16.mxu0 0
    %1644 = vmatpush1.bf16.msra.mxu0 0
    %1645 = vmatprep.subr.bf16.mxu0 0
    %1646 = vmatpush1.bf16.msra.mxu0 0
    %1647 = vmatprep.subr.bf16.mxu0 0
    %1648 = vmatpush1.bf16.msra.mxu0 0
    %1649 = vmatprep.subr.bf16.mxu0 0
    %1650 = vmatpush1.bf16.msra.mxu0 0
    %1651 = vmatprep.subr.bf16.mxu0 0
    %1652 = vmatpush1.bf16.msra.mxu0 0
    %1653 = vmatprep.subr.bf16.mxu0 0
    %1654 = vmatpush1.bf16.msra.mxu0 0
    %1655 = vmatprep.mubr.bf16.mxu0 0
    %1656 = vmatmul.mubr.bf16.gmra.mrb[0].mxu0 %v1621
    %v1657 = vpop.f32.mrb[0].mxu0
    %v1658 = vadd.f32 0.0, %v1657
    %v1659 = vpop.f32.mrb[0].mxu0
    %v1660 = vadd.f32 0.0, %v1659
    %v1661 = vpop.f32.mrb[0].mxu0
    %v1662 = vpop.f32.mrb[0].mxu0
    %1663 = vdwg.mxu0
    %v1664 = vadd.f32 %v1613, %v1658
    %v1665 = vadd.f32 %v1615, %v1660
    %v1666 = vxor.u32 %v1664, 2147483648
    %v1667 = vxor.u32 %v1665, 2147483648
    %v1668 = vmul.f32 %v1666, 1.442695
    %v1669 = vpow.pop %v1668
    %v1670 = vmul.f32 %v1667, 1.442695
    %v1671 = vpow.pop %v1670
    %v1672 = vadd.f32 %v1669, 1.0
    %v1673 = vadd.f32 %v1671, 1.0
    %v1674 = vrcp.pop %v1672
    %v1675 = vmul.f32 1.0, %v1674
    %v1676 = vrcp.pop %v1673
    %v1677 = vmul.f32 1.0, %v1676
    %v1678 = vtanh.pop %v1665
    %v1679 = vmul.f32 %v1675, %v1483
    %1681 = vrot.lane.b32.xlu0 %v1678, 64
    %v1682 = vpop.permute.xlu0 %1681
    %v1684 = vmul.f32 %v1675, %v1682
    %1686 = vrot.lane.b32.xlu0 %v1684, 64
    %v1687 = vpop.permute.xlu0 %1686
    %v1689 = vadd.f32 %v1679, %v1687
    %v1690 = vtanh.pop %v1689
    %1692 = vrot.lane.b32.xlu0 %v1690, 64
    %v1693 = vpop.permute.xlu0 %1692
    %v1695 = vmul.f32 %v1677, %v1693
    %v1696 = vpack.c.bf16 %v1695, %v1695
    %s1697 = scalar_lea.vmem %s0, 56
    %v1698 = vld [vmem:[%s1697] sm:$0xff]
    %1700 = vset.pattern.permute.xlu0 0
    %1701 = vperm.xlu0 %1700, %v1698
    %v1702 = vpop.permute.xlu0 %1701
    %v1704 = vmul.f32 %v1702, %v80
    %v1705 = vmul.f32 %v1702, %v84
    %v1706 = vadd.f32 %v92, %v1704
    %v1707 = vadd.f32 %v96, %v1705
    %1708 = vmatprep.subr.bf16.mxu0 %v162
    %1709 = vmatpush1.bf16.msra.mxu0 %v161
    %1710 = vmatprep.subr.bf16.mxu0 %v164
    %1711 = vmatpush1.bf16.msra.mxu0 %v163
    %1712 = vmatprep.subr.bf16.mxu0 %v166
    %1713 = vmatpush1.bf16.msra.mxu0 %v165
    %1714 = vmatprep.subr.bf16.mxu0 %v168
    %1715 = vmatpush1.bf16.msra.mxu0 %v167
    %1716 = vmatprep.subr.bf16.mxu0 0
    %1717 = vmatpush1.bf16.msra.mxu0 0
    %1718 = vmatprep.subr.bf16.mxu0 0
    %1719 = vmatpush1.bf16.msra.mxu0 0
    %1720 = vmatprep.subr.bf16.mxu0 0
    %1721 = vmatpush1.bf16.msra.mxu0 0
    %1722 = vmatprep.subr.bf16.mxu0 0
    %1723 = vmatpush1.bf16.msra.mxu0 0
    %1724 = vmatprep.subr.bf16.mxu0 0
    %1725 = vmatpush1.bf16.msra.mxu0 0
    %1726 = vmatprep.subr.bf16.mxu0 0
    %1727 = vmatpush1.bf16.msra.mxu0 0
    %1728 = vmatprep.subr.bf16.mxu0 0
    %1729 = vmatpush1.bf16.msra.mxu0 0
    %1730 = vmatprep.subr.bf16.mxu0 0
    %1731 = vmatpush1.bf16.msra.mxu0 0
    %1732 = vmatprep.subr.bf16.mxu0 0
    %1733 = vmatpush1.bf16.msra.mxu0 0
    %1734 = vmatprep.subr.bf16.mxu0 0
    %1735 = vmatpush1.bf16.msra.mxu0 0
    %1736 = vmatprep.subr.bf16.mxu0 0
    %1737 = vmatpush1.bf16.msra.mxu0 0
    %1738 = vmatprep.subr.bf16.mxu0 0
    %1739 = vmatpush1.bf16.msra.mxu0 0
    %1740 = vmatprep.mubr.bf16.mxu0 0
    %1741 = vmatmul.mubr.bf16.gmra.mrb[0].mxu0 %v1621
    %v1742 = vpop.f32.mrb[0].mxu0
    %v1743 = vadd.f32 0.0, %v1742
    %v1744 = vpop.f32.mrb[0].mxu0
    %v1745 = vadd.f32 0.0, %v1744
    %v1746 = vpop.f32.mrb[0].mxu0
    %v1747 = vpop.f32.mrb[0].mxu0
    %1748 = vdwg.mxu0
    %v1749 = vadd.f32 %v1706, %v1743
    %v1750 = vadd.f32 %v1707, %v1745
    %v1751 = vxor.u32 %v1749, 2147483648
    %v1752 = vxor.u32 %v1750, 2147483648
    %v1753 = vmul.f32 %v1751, 1.442695
    %v1754 = vpow.pop %v1753
    %v1755 = vmul.f32 %v1752, 1.442695
    %v1756 = vpow.pop %v1755
    %v1757 = vadd.f32 %v1754, 1.0
    %v1758 = vadd.f32 %v1756, 1.0
    %v1759 = vrcp.pop %v1757
    %v1760 = vmul.f32 1.0, %v1759
    %v1761 = vrcp.pop %v1758
    %v1762 = vmul.f32 1.0, %v1761
    %v1763 = vtanh.pop %v1750
    %v1764 = vmul.f32 %v1760, %v1568
    %1766 = vrot.lane.b32.xlu0 %v1763, 64
    %v1767 = vpop.permute.xlu0 %1766
    %v1769 = vmul.f32 %v1760, %v1767
    %1771 = vrot.lane.b32.xlu0 %v1769, 64
    %v1772 = vpop.permute.xlu0 %1771
    %v1774 = vadd.f32 %v1764, %v1772
    %v1775 = vtanh.pop %v1774
    %1777 = vrot.lane.b32.xlu0 %v1775, 64
    %v1778 = vpop.permute.xlu0 %1777
    %v1780 = vmul.f32 %v1762, %v1778
    %v1782 = vsel %vm177, %v1696, 0
    %1784 = vmatprep.subr.bf16.mxu0 %v279
    %1785 = vmatpush1.bf16.msra.mxu0 %v278
    %1786 = vmatprep.subr.bf16.mxu0 %v281
    %1787 = vmatpush1.bf16.msra.mxu0 %v280
    %1788 = vmatprep.subr.bf16.mxu0 %v283
    %1789 = vmatpush1.bf16.msra.mxu0 %v282
    %1790 = vmatprep.subr.bf16.mxu0 %v285
    %1791 = vmatpush1.bf16.msra.mxu0 %v284
    %1792 = vmatprep.subr.bf16.mxu0 0
    %1793 = vmatpush1.bf16.msra.mxu0 0
    %1794 = vmatprep.subr.bf16.mxu0 0
    %1795 = vmatpush1.bf16.msra.mxu0 0
    %1796 = vmatprep.subr.bf16.mxu0 0
    %1797 = vmatpush1.bf16.msra.mxu0 0
    %1798 = vmatprep.subr.bf16.mxu0 0
    %1799 = vmatpush1.bf16.msra.mxu0 0
    %1800 = vmatprep.subr.bf16.mxu0 0
    %1801 = vmatpush1.bf16.msra.mxu0 0
    %1802 = vmatprep.subr.bf16.mxu0 0
    %1803 = vmatpush1.bf16.msra.mxu0 0
    %1804 = vmatprep.subr.bf16.mxu0 0
    %1805 = vmatpush1.bf16.msra.mxu0 0
    %1806 = vmatprep.subr.bf16.mxu0 0
    %1807 = vmatpush1.bf16.msra.mxu0 0
    %1808 = vmatprep.subr.bf16.mxu0 0
    %1809 = vmatpush1.bf16.msra.mxu0 0
    %1810 = vmatprep.subr.bf16.mxu0 0
    %1811 = vmatpush1.bf16.msra.mxu0 0
    %1812 = vmatprep.subr.bf16.mxu0 0
    %1813 = vmatpush1.bf16.msra.mxu0 0
    %1814 = vmatprep.subr.bf16.mxu0 0
    %1815 = vmatpush1.bf16.msra.mxu0 0
    %1816 = vmatprep.mubr.bf16.mxu0 0
    %1817 = vmatmul.mubr.bf16.gmra.mrb[0].mxu0 %v1782
    %v1818 = vpop.f32.mrb[0].mxu0
    %v1819 = vadd.f32 %v104, %v1818
    %v1820 = vpop.f32.mrb[0].mxu0
    %v1821 = vadd.f32 %v108, %v1820
    %v1822 = vpop.f32.mrb[0].mxu0
    %v1823 = vpop.f32.mrb[0].mxu0
    %1824 = vdwg.mxu0
    %v1825 = vpack.c.bf16 %v1780, %v1780
    %v1827 = vsel %vm177, %v1825, 0
    %1829 = vmatprep.subr.bf16.mxu0 %v369
    %1830 = vmatpush1.bf16.msra.mxu0 %v368
    %1831 = vmatprep.subr.bf16.mxu0 %v371
    %1832 = vmatpush1.bf16.msra.mxu0 %v370
    %1833 = vmatprep.subr.bf16.mxu0 %v373
    %1834 = vmatpush1.bf16.msra.mxu0 %v372
    %1835 = vmatprep.subr.bf16.mxu0 %v375
    %1836 = vmatpush1.bf16.msra.mxu0 %v374
    %1837 = vmatprep.subr.bf16.mxu0 0
    %1838 = vmatpush1.bf16.msra.mxu0 0
    %1839 = vmatprep.subr.bf16.mxu0 0
    %1840 = vmatpush1.bf16.msra.mxu0 0
    %1841 = vmatprep.subr.bf16.mxu0 0
    %1842 = vmatpush1.bf16.msra.mxu0 0
    %1843 = vmatprep.subr.bf16.mxu0 0
    %1844 = vmatpush1.bf16.msra.mxu0 0
    %1845 = vmatprep.subr.bf16.mxu0 0
    %1846 = vmatpush1.bf16.msra.mxu0 0
    %1847 = vmatprep.subr.bf16.mxu0 0
    %1848 = vmatpush1.bf16.msra.mxu0 0
    %1849 = vmatprep.subr.bf16.mxu0 0
    %1850 = vmatpush1.bf16.msra.mxu0 0
    %1851 = vmatprep.subr.bf16.mxu0 0
    %1852 = vmatpush1.bf16.msra.mxu0 0
    %1853 = vmatprep.subr.bf16.mxu0 0
    %1854 = vmatpush1.bf16.msra.mxu0 0
    %1855 = vmatprep.subr.bf16.mxu0 0
    %1856 = vmatpush1.bf16.msra.mxu0 0
    %1857 = vmatprep.subr.bf16.mxu0 0
    %1858 = vmatpush1.bf16.msra.mxu0 0
    %1859 = vmatprep.subr.bf16.mxu0 0
    %1860 = vmatpush1.bf16.msra.mxu0 0
    %1861 = vmatprep.mubr.bf16.mxu0 0
    %1862 = vmatmul.mubr.bf16.gmra.mrb[0].mxu0 %v1827
    %v1863 = vpop.f32.mrb[0].mxu0
    %v1864 = vadd.f32 0.0, %v1863
    %v1865 = vpop.f32.mrb[0].mxu0
    %v1866 = vadd.f32 0.0, %v1865
    %v1867 = vpop.f32.mrb[0].mxu0
    %v1868 = vpop.f32.mrb[0].mxu0
    %1869 = vdwg.mxu0
    %v1870 = vadd.f32 %v1819, %v1864
    %v1871 = vadd.f32 %v1821, %v1866
    %v1872 = vxor.u32 %v1870, 2147483648
    %v1873 = vxor.u32 %v1871, 2147483648
    %v1874 = vmul.f32 %v1872, 1.442695
    %v1875 = vpow.pop %v1874
    %v1876 = vmul.f32 %v1873, 1.442695
    %v1877 = vpow.pop %v1876
    %v1878 = vadd.f32 %v1875, 1.0
    %v1879 = vadd.f32 %v1877, 1.0
    %v1880 = vrcp.pop %v1878
    %v1881 = vmul.f32 1.0, %v1880
    %v1882 = vrcp.pop %v1879
    %v1883 = vmul.f32 1.0, %v1882
    %v1884 = vtanh.pop %v1871
    %v1885 = vmul.f32 %v1881, %v1689
    %1887 = vrot.lane.b32.xlu0 %v1884, 64
    %v1888 = vpop.permute.xlu0 %1887
    %v1890 = vmul.f32 %v1881, %v1888
    %1892 = vrot.lane.b32.xlu0 %v1890, 64
    %v1893 = vpop.permute.xlu0 %1892
    %v1895 = vadd.f32 %v1885, %v1893
    %v1896 = vtanh.pop %v1895
    %1898 = vrot.lane.b32.xlu0 %v1896, 64
    %v1899 = vpop.permute.xlu0 %1898
    %v1901 = vmul.f32 %v1883, %v1899
    %v1902 = vld [vmem:[#allocation7] sm:$0xff]
    %v1903 = vld [vmem:[#allocation7 + $0x8] sm:$0xff]
    %v1904 = vld [vmem:[#allocation7 + $0x10] sm:$0xff]
    %v1905 = vld [vmem:[#allocation7 + $0x18] sm:$0xff]
    %v1906 = vld [vmem:[#allocation7 + $0x20] sm:$0xff]
    %v1907 = vld [vmem:[#allocation7 + $0x28] sm:$0xff]
    %v1908 = vld [vmem:[#allocation7 + $0x30] sm:$0xff]
    %v1909 = vld [vmem:[#allocation7 + $0x38] sm:$0xff]
    %v1910 = vld [vmem:[%s8] sm:$0x1]
    %v1912 = vlaneseq
    %v1913 = vshrl.u32 %v1912, 7
    %v1914 = vsub.s32 0, %v1913
    %v1915 = vrot.slane %v1910, %v1914
    %v1918 = vsel %vm177, %v1901, 0
    %1920 = vmatprep.subr.mxu0 0.0
    %1921 = vmatpush1.msra.mxu0 %v1902
    %1922 = vmatprep.subr.mxu0 0.0
    %1923 = vmatpush1.msra.mxu0 %v1903
    %1924 = vmatprep.subr.mxu0 0.0
    %1925 = vmatpush1.msra.mxu0 %v1904
    %1926 = vmatprep.subr.mxu0 0.0
    %1927 = vmatpush1.msra.mxu0 %v1905
    %1928 = vmatprep.subr.mxu0 0.0
    %1929 = vmatpush1.msra.mxu0 %v1906
    %1930 = vmatprep.subr.mxu0 0.0
    %1931 = vmatpush1.msra.mxu0 %v1907
    %1932 = vmatprep.subr.mxu0 0.0
    %1933 = vmatpush1.msra.mxu0 %v1908
    %1934 = vmatprep.subr.mxu0 0.0
    %1935 = vmatpush1.msra.mxu0 %v1909
    %1936 = vmatprep.subr.mxu0 0.0
    %1937 = vmatpush1.msra.mxu0 0.0
    %1938 = vmatprep.subr.mxu0 0.0
    %1939 = vmatpush1.msra.mxu0 0.0
    %1940 = vmatprep.subr.mxu0 0.0
    %1941 = vmatpush1.msra.mxu0 0.0
    %1942 = vmatprep.subr.mxu0 0.0
    %1943 = vmatpush1.msra.mxu0 0.0
    %1944 = vmatprep.subr.mxu0 0.0
    %1945 = vmatpush1.msra.mxu0 0.0
    %1946 = vmatprep.subr.mxu0 0.0
    %1947 = vmatpush1.msra.mxu0 0.0
    %1948 = vmatprep.subr.mxu0 0.0
    %1949 = vmatpush1.msra.mxu0 0.0
    %1950 = vmatprep.subr.mxu0 0.0
    %1951 = vmatpush1.msra.mxu0 0.0
    %1952 = vmatprep.subr.mxu0 0.0
    %1953 = vmatpush1.msra.mxu0 0.0
    %1954 = vmatprep.subr.mxu0 0.0
    %1955 = vmatpush1.msra.mxu0 0.0
    %1956 = vmatprep.subr.mxu0 0.0
    %1957 = vmatpush1.msra.mxu0 0.0
    %1958 = vmatprep.subr.mxu0 0.0
    %1959 = vmatpush1.msra.mxu0 0.0
    %1960 = vmatprep.subr.mxu0 0.0
    %1961 = vmatpush1.msra.mxu0 0.0
    %1962 = vmatprep.subr.mxu0 0.0
    %1963 = vmatpush1.msra.mxu0 0.0
    %1964 = vmatprep.subr.mxu0 0.0
    %1965 = vmatpush1.msra.mxu0 0.0
    %1966 = vmatprep.subr.mxu0 0.0
    %1967 = vmatpush1.msra.mxu0 0.0
    %1968 = vmatprep.subr.mxu0 0.0
    %1969 = vmatpush1.msra.mxu0 0.0
    %1970 = vmatprep.subr.mxu0 0.0
    %1971 = vmatpush1.msra.mxu0 0.0
    %1972 = vmatprep.subr.mxu0 0.0
    %1973 = vmatpush1.msra.mxu0 0.0
    %1974 = vmatprep.subr.mxu0 0.0
    %1975 = vmatpush1.msra.mxu0 0.0
    %1976 = vmatprep.subr.mxu0 0.0
    %1977 = vmatpush1.msra.mxu0 0.0
    %1978 = vmatprep.subr.mxu0 0.0
    %1979 = vmatpush1.msra.mxu0 0.0
    %1980 = vmatprep.subr.mxu0 0.0
    %1981 = vmatpush1.msra.mxu0 0.0
    %1982 = vmatprep.subr.mxu0 0.0
    %1983 = vmatpush1.msra.mxu0 0.0
    %1984 = vmatprep.mubr.f32.mxu0 0.0
    %1985 = vmatmul.mubr.f32.gmra.mrb[0].mxu0 %v1918
    %v1986 = vpop.f32.mrb[0].mxu0
    %v1987 = vadd.f32 %v1915, %v1986
    %v1988 = vpop.f32.mrb[0].mxu0
    %1989 = vdwg.mxu0
    %1990 = vst [vmem:[#allocation8] sm:$0xff] %v1987
    // Predicated region
    $region50: #{tpu_custom_call.1} parent=1 // pred_check
      _
    $region51: #{tpu_custom_call.1} parent=1 // pred_check_branch
      %1992 = sbr.rel (0) target = $region53
    $region52: #{tpu_custom_call.1} parent=1 // pred_region
      %s1994 = ssub.s32 128, 128
      %1995 = vsyncadd [#allocation4], %s1994
      %s1997 = sshll.u32 [#allocation8], 4
      %s1998 = int_to_ptr.vmem [resolvable:$true] %s1997
      %2000 = dma.vmem_to_hbm [thread:$0]  %s1998, 128, %s9, [#allocation4]
    $region53: #{tpu_custom_call.1} parent=1 // pred_fallthru
      _
    // Predicated region
    $region54: #{tpu_custom_call.1} parent=1 // pred_check
      _
    $region55: #{tpu_custom_call.1} parent=1 // pred_check_branch
      %2002 = sbr.rel (0) target = $region57
    $region56: #{tpu_custom_call.1} parent=1 // pred_region
      %2003 = dma.done [#allocation4], 128
    $region57: #{tpu_custom_call.1} parent=1 // pred_fallthru
      _
    %2004 = vsyncpa [#allocation3], 1
    %2005 = vsyncpa [#allocation6], 1
    %2006 = vsyncpa [#allocation4], 1

</llo_original>
